<compile_context>
chip_gen: v5e
topology: v5e:2x2
jax: 0.10.0
libtpu: 0.0.40
codegen_flags: <defaults>
</compile_context>

<pallas_src>
import numpy as np
import jax
import jax.numpy as jnp
from jax import lax
from jax.experimental import pallas as pl
from jax.experimental.pallas import tpu as pltpu

S = 16          # sequence length (len_seq)
D = 32          # THP hidden dim  (dim_of_THP)
DFF = 64        # THP inner dim   (dim_inner_of_THP)
NUM_TYPES = 4   # num_types
LEN_FEAT = 2    # len_feat


def _glr_sweep_kernel(cp_ref, end_ref,                      # scalar prefetch (SMEM)
                      x_ref, dt_ref, noh_ref,               # data (VMEM, resident)
                      wqkv_ref, wo_ref, w1_ref, w2_ref,     # stacked weights (VMEM)
                      wlt_ref, blt_ref,
                      out_ref):                             # (1, 8, 128) per candidate
    """One grid step = one candidate change point; evaluates both THP models."""
    cand = pl.program_id(0)
    cp = cp_ref[cand]                    # first index of the after-cp segment
    ei = end_ref[cand]                   # one-past-last index of the segment

    dt = dt_ref[...]                     # [S, 1]
    next_oh = noh_ref[...]               # [S, NUM_TYPES]

    # segment masks built in-kernel from the prefetched scalars
    idx = lax.broadcasted_iota(jnp.int32, (S, 1), 0)
    seg = ((idx >= cp) & (idx < ei)).astype(jnp.float32)        # events in segment
    nmask = ((idx >= cp) & (idx < ei - 1)).astype(jnp.float32)  # has next event in segment

    # causal + segment attention mask (hoisted out of the per-model loop)
    row = lax.broadcasted_iota(jnp.int32, (S, S), 0)
    col = lax.broadcasted_iota(jnp.int32, (S, S), 1)
    seg_b = seg[:, 0] > 0.5
    allowed = (col <= row) & seg_b[None, :] & seg_b[:, None]

    inv_sqrt_d = np.float32(1.0 / np.sqrt(D))

    nlls = []
    for m in range(2):                   # m=0: model_before_cp, m=1: model_after_cp
        x = x_ref[m]                     # [S, D]

        # --- single-layer causal self-attention, fused QKV projection (MXU) ---
        qkv = jnp.dot(x, wqkv_ref[m], preferred_element_type=jnp.float32)   # [S, 3D]
        q = qkv[:, :D]
        k = qkv[:, D:2 * D]
        v = qkv[:, 2 * D:]
        scores = jnp.dot(q, k.T, preferred_element_type=jnp.float32) * inv_sqrt_d
        scores = jnp.where(allowed, scores, -1e9)

        mrow = jnp.max(scores, axis=-1, keepdims=True)
        e = jnp.exp(scores - mrow)
        attn = e / jnp.sum(e, axis=-1, keepdims=True)

        h = jnp.dot(attn, v, preferred_element_type=jnp.float32)
        h = jnp.dot(h, wo_ref[m], preferred_element_type=jnp.float32) + x

        # --- position-wise FFN with residual ---
        ff = jnp.maximum(jnp.dot(h, w1_ref[m], preferred_element_type=jnp.float32), 0.0)
        h = jnp.dot(ff, w2_ref[m], preferred_element_type=jnp.float32) + h

        # --- fused intensity / mark-logit projection ---
        lt = jnp.dot(h, wlt_ref[m], preferred_element_type=jnp.float32) + blt_ref[m]
        z = lt[:, :NUM_TYPES]            # intensity pre-activations
        logits = lt[:, NUM_TYPES:]       # mark logits

        lam = jnp.maximum(z, 0.0) + jnp.log1p(jnp.exp(-jnp.abs(z)))   # softplus
        lam_tot = jnp.sum(lam, axis=-1, keepdims=True)                # [S, 1]

        lm = jnp.max(logits, axis=-1, keepdims=True)
        lse = lm + jnp.log(jnp.sum(jnp.exp(logits - lm), axis=-1, keepdims=True))
        logp = logits - lse

        # --- log-likelihoods (Utils.log_likelihood_array / _mark_array + sums) ---
        ll_time = jnp.sum(seg * (jnp.log(lam_tot + 1e-9) - lam_tot * dt))
        ll_mark = jnp.sum(nmask * jnp.sum(next_oh * logp, axis=-1, keepdims=True))
        nlls.append(-(ll_time + ll_mark))

    nll_before, nll_after = nlls
    score = nll_before - nll_after       # -(tot_loss_after - tot_loss_before)

    # lane-dense output tile: [score, nll_before, nll_after] in lanes 0..2
    sub = lax.broadcasted_iota(jnp.int32, (1, 8, 128), 1)
    lane = lax.broadcasted_iota(jnp.int32, (1, 8, 128), 2)
    tile = jnp.where((sub == 0) & (lane == 0), score,
           jnp.where((sub == 0) & (lane == 1), nll_before,
           jnp.where((sub == 0) & (lane == 2), nll_after, 0.0)))
    out_ref[...] = tile


def glr_sweep(cp_idx, end_idx, x2, dt, next_oh, wqkv, wo, w1, w2, wlt, blt):
    """Run the full greedy GLR sweep in one pallas_call (grid over candidates)."""
    n = int(cp_idx.shape[0])

    def _resident(shape):
        # constant index_map: DMA once, stay VMEM-resident across the grid
        zeros = (0,) * len(shape)
        return pl.BlockSpec(shape, lambda i, cp, ei, z=zeros: z)

    out = pl.pallas_call(
        _glr_sweep_kernel,
        out_shape=jax.ShapeDtypeStruct((n, 8, 128), jnp.float32),
        grid_spec=pltpu.PrefetchScalarGridSpec(
            num_scalar_prefetch=2,
            grid=(n,),
            in_specs=[
                _resident((2, S, D)),                 # x (both models)
                _resident((S, 1)),                    # dt
                _resident((S, NUM_TYPES)),            # next-type one-hot
                _resident((2, D, 3 * D)),             # fused Wq|Wk|Wv
                _resident((2, D, D)),                 # Wo
                _resident((2, D, DFF)),               # W1
                _resident((2, DFF, D)),               # W2
                _resident((2, D, 2 * NUM_TYPES)),     # fused Wlam|Wtype
                _resident((2, 1, 2 * NUM_TYPES)),     # fused blam|btype
            ],
            out_specs=pl.BlockSpec((1, 8, 128), lambda i, cp, ei: (i, 0, 0)),
        ),
        compiler_params=pltpu.CompilerParams(dimension_semantics=("parallel",)),
    )(cp_idx, end_idx, x2, dt, next_oh, wqkv, wo, w1, w2, wlt, blt)
    return out


def init_params(key):
    ks = jax.random.split(key, 10)

    def w(k, shape, scale):
        return (jax.random.normal(k, shape, dtype=jnp.float32) * scale).astype(jnp.float32)

    return dict(
        type_emb=w(ks[0], (NUM_TYPES + 1, D), 0.1),
        wfeat=w(ks[1], (LEN_FEAT, D), 0.1),
        wq=w(ks[2], (D, D), 1.0 / np.sqrt(D)),
        wk=w(ks[3], (D, D), 1.0 / np.sqrt(D)),
        wv=w(ks[4], (D, D), 1.0 / np.sqrt(D)),
        wo=w(ks[5], (D, D), 1.0 / np.sqrt(D)),
        w1=w(ks[6], (D, DFF), 1.0 / np.sqrt(D)),
        w2=w(ks[7], (DFF, D), 1.0 / np.sqrt(DFF)),
        wlam=w(ks[8], (D, NUM_TYPES), 1.0 / np.sqrt(D)),
        blam=jnp.zeros((1, NUM_TYPES), jnp.float32),
        wtype=w(ks[9], (D, NUM_TYPES), 1.0 / np.sqrt(D)),
        btype=jnp.zeros((1, NUM_TYPES), jnp.float32),
    )


def embed(times, types, feats, params):
    # sinusoidal temporal encoding + type embedding + feature projection (glue)
    pos = times[:, None].astype(jnp.float32)
    i = jnp.arange(D // 2, dtype=jnp.float32)
    div = jnp.power(10000.0, 2.0 * i / D)
    te = jnp.zeros((S, D), jnp.float32)
    te = te.at[:, 0::2].set(jnp.sin(pos / div))
    te = te.at[:, 1::2].set(jnp.cos(pos / div))
    type_e = params["type_emb"][types]                 # gather (glue)
    feat_e = feats.astype(jnp.float32) @ params["wfeat"]
    return (te + type_e + feat_e).astype(jnp.float32)


if __name__ == "__main__":
    key = jax.random.PRNGKey(0)
    k_t, k_type, k_feat, kp_before, kp_after = jax.random.split(key, 5)

    # synthetic point-process data (data_time strictly increasing, types in 1..K)
    gaps = jax.random.uniform(k_t, (S,), minval=0.2, maxval=1.0)
    data_time = jnp.cumsum(gaps)                       # [S]
    data_type = jax.random.randint(k_type, (S,), 1, NUM_TYPES + 1)   # [S]
    data_feat = jax.random.normal(k_feat, (S, LEN_FEAT), jnp.float32)

    # TODO(synk): the per-candidate Adam training loops of model_before_cp /
    # model_after_cp (and Utils.* file logging) have no Pallas equivalent;
    # both models use fixed deterministic parameters instead.
    params_before = init_params(kp_before)
    params_after = init_params(kp_after)

    x2 = jnp.stack([embed(data_time, data_type, data_feat, params_before),
                    embed(data_time, data_type, data_feat, params_after)])   # [2, S, D]

    dt = jnp.diff(data_time, prepend=data_time[:1])[:, None]                 # [S, 1]
    next_types = jnp.concatenate([data_type[1:], data_type[-1:]]) - 1        # type[1:]-1
    next_oh = jax.nn.one_hot(next_types, NUM_TYPES, dtype=jnp.float32)       # [S, NUM_TYPES]

    def stack_fused(pb, pa):
        wqkv = jnp.stack([jnp.concatenate([pb["wq"], pb["wk"], pb["wv"]], axis=1),
                          jnp.concatenate([pa["wq"], pa["wk"], pa["wv"]], axis=1)])
        wo = jnp.stack([pb["wo"], pa["wo"]])
        w1 = jnp.stack([pb["w1"], pa["w1"]])
        w2 = jnp.stack([pb["w2"], pa["w2"]])
        wlt = jnp.stack([jnp.concatenate([pb["wlam"], pb["wtype"]], axis=1),
                         jnp.concatenate([pa["wlam"], pa["wtype"]], axis=1)])
        blt = jnp.stack([jnp.concatenate([pb["blam"], pb["btype"]], axis=1),
                         jnp.concatenate([pa["blam"], pa["btype"]], axis=1)])
        return wqkv, wo, w1, w2, wlt, blt

    wqkv, wo, w1, w2, wlt, blt = stack_fused(params_before, params_after)

    # opt.* hyper-parameters used by GLR_Hawkes.forward
    opt_window_length = float(data_time[3])
    opt_gamma = 4
    opt_min_window_length_index = 2

    # ---- host-side candidate enumeration (pure index/time arithmetic;
    #      identical control flow to the original while-loop, which never
    #      depends on the NLL scores) ----
    times_np = np.asarray(data_time)
    finish_time = float(times_np[-1])
    cp_index = int(np.argmax(times_np > opt_window_length))
    cp_time = float(times_np[cp_index])
    if np.any(times_np > cp_time + opt_window_length):
        end_index = int(np.argmax(times_np > cp_time + opt_window_length))
    else:
        end_index = S

    candidates = []
    while True:
        candidates.append((cp_index, end_index, cp_time))
        cp_index = cp_index + opt_gamma
        if cp_index >= S:
            break
        cp_time = float(times_np[cp_index])
        if cp_time + opt_window_length > finish_time:
            break
        end_index = int(np.argmax(times_np > cp_time + opt_window_length))
        if end_index - cp_index < opt_min_window_length_index:
            break

    cp_idx_arr = jnp.asarray([c[0] for c in candidates], jnp.int32)
    end_idx_arr = jnp.asarray([c[1] for c in candidates], jnp.int32)

    # ---- one fused kernel launch for the entire greedy sweep ----
    out = glr_sweep(cp_idx_arr, end_idx_arr, x2, dt, next_oh,
                    wqkv, wo, w1, w2, wlt, blt)
    out = jax.block_until_ready(out)

    out_np = np.asarray(out)                  # [num_candidates, 8, 128]
    scores = out_np[:, 0, 0]
    nll_before = out_np[:, 0, 1]
    nll_after = out_np[:, 0, 2]

    ll_ratio = [(c[0], c[1], float(scores[i]), c[2]) for i, c in enumerate(candidates)]

    assert len(ll_ratio) >= 1
    assert np.all(np.isfinite(scores))
    assert np.all(np.isfinite(nll_before)) and np.all(np.isfinite(nll_after))
    print("KERNEL_OK")
</pallas_src>

<mosaic_0001>
module attributes {stable_mosaic.version = 11 : i64} {
  func.func @_glr_sweep_kernel(%arg0: i32, %arg1: memref<3xi32, #tpu.memory_space<smem>>, %arg2: memref<3xi32, #tpu.memory_space<smem>>, %arg3: memref<2x16x32xf32, #tpu.memory_space<vmem>>, %arg4: memref<16x1xf32, #tpu.memory_space<vmem>>, %arg5: memref<16x4xf32, #tpu.memory_space<vmem>>, %arg6: memref<2x32x96xf32, #tpu.memory_space<vmem>>, %arg7: memref<2x32x32xf32, #tpu.memory_space<vmem>>, %arg8: memref<2x32x64xf32, #tpu.memory_space<vmem>>, %arg9: memref<2x64x32xf32, #tpu.memory_space<vmem>>, %arg10: memref<2x32x8xf32, #tpu.memory_space<vmem>>, %arg11: memref<2x1x8xf32, #tpu.memory_space<vmem>>, %arg12: memref<1x8x128xf32, #tpu.memory_space<vmem>>) attributes {dimension_semantics = [#tpu.dimension_semantics<parallel>], iteration_bounds = array<i64: 3>, scalar_prefetch = 2 : i64, scratch_operands = 0 : i64, tpu.core_type = #tpu.core_type<tc>, window_params = [{pipeline_mode = #tpu.pipeline_mode<synchronous>, transform_indices = @transform_0, window_bounds = array<i64: 2, 16, 32>}, {pipeline_mode = #tpu.pipeline_mode<synchronous>, transform_indices = @transform_1, window_bounds = array<i64: 16, 1>}, {pipeline_mode = #tpu.pipeline_mode<synchronous>, transform_indices = @transform_2, window_bounds = array<i64: 16, 4>}, {pipeline_mode = #tpu.pipeline_mode<synchronous>, transform_indices = @transform_3, window_bounds = array<i64: 2, 32, 96>}, {pipeline_mode = #tpu.pipeline_mode<synchronous>, transform_indices = @transform_4, window_bounds = array<i64: 2, 32, 32>}, {pipeline_mode = #tpu.pipeline_mode<synchronous>, transform_indices = @transform_5, window_bounds = array<i64: 2, 32, 64>}, {pipeline_mode = #tpu.pipeline_mode<synchronous>, transform_indices = @transform_6, window_bounds = array<i64: 2, 64, 32>}, {pipeline_mode = #tpu.pipeline_mode<synchronous>, transform_indices = @transform_7, window_bounds = array<i64: 2, 32, 8>}, {pipeline_mode = #tpu.pipeline_mode<synchronous>, transform_indices = @transform_8, window_bounds = array<i64: 2, 1, 8>}, {transform_indices = @transform_9, window_bounds = array<i64: 1, 8, 128>}]} {
    %0 = arith.index_cast %arg0 : i32 to index
    %1 = memref.load %arg1[%0] : memref<3xi32, #tpu.memory_space<smem>>
    %2 = arith.index_cast %arg0 : i32 to index
    %3 = memref.load %arg2[%2] : memref<3xi32, #tpu.memory_space<smem>>
    %c0 = arith.constant 0 : index
    %c0_0 = arith.constant 0 : index
    %4 = vector.load %arg4[%c0, %c0_0] : memref<16x1xf32, #tpu.memory_space<vmem>>, vector<16x1xf32>
    %c0_1 = arith.constant 0 : index
    %c0_2 = arith.constant 0 : index
    %5 = vector.load %arg5[%c0_1, %c0_2] : memref<16x4xf32, #tpu.memory_space<vmem>>, vector<16x4xf32>
    %6 = tpu.iota {dimensions = array<i32: 0>} : vector<16x1xi32>
    %7 = vector.broadcast %1 : i32 to vector<16x1xi32>
    %8 = arith.cmpi sge, %6, %7 : vector<16x1xi32>
    %9 = vector.broadcast %3 : i32 to vector<16x1xi32>
    %10 = arith.cmpi slt, %6, %9 : vector<16x1xi32>
    %11 = arith.andi %8, %10 : vector<16x1xi1>
    %12 = arith.extui %11 : vector<16x1xi1> to vector<16x1xi32>
    %13 = arith.sitofp %12 : vector<16x1xi32> to vector<16x1xf32>
    %14 = vector.broadcast %1 : i32 to vector<16x1xi32>
    %15 = arith.cmpi sge, %6, %14 : vector<16x1xi32>
    %c1_i32 = arith.constant 1 : i32
    %16 = arith.subi %3, %c1_i32 : i32
    %17 = vector.broadcast %16 : i32 to vector<16x1xi32>
    %18 = arith.cmpi slt, %6, %17 : vector<16x1xi32>
    %19 = arith.andi %15, %18 : vector<16x1xi1>
    %20 = arith.extui %19 : vector<16x1xi1> to vector<16x1xi32>
    %21 = arith.sitofp %20 : vector<16x1xi32> to vector<16x1xf32>
    %22 = tpu.iota {dimensions = array<i32: 0>} : vector<16x16xi32>
    %23 = tpu.iota {dimensions = array<i32: 1>} : vector<16x16xi32>
    %24 = vector.shape_cast %13 : vector<16x1xf32> to vector<16xf32>
    %cst = arith.constant 5.000000e-01 : f32
    %25 = vector.broadcast %cst : f32 to vector<16xf32>
    %26 = arith.cmpf ogt, %24, %25 : vector<16xf32>
    %27 = arith.cmpi sle, %23, %22 : vector<16x16xi32>
    %28 = vector.shape_cast %26 : vector<16xi1> to vector<1x16xi1>
    %29 = vector.broadcast %28 : vector<1x16xi1> to vector<16x16xi1>
    %30 = arith.andi %27, %29 : vector<16x16xi1>
    %31 = vector.shape_cast %26 : vector<16xi1> to vector<16x1xi1>
    %32 = vector.broadcast %31 : vector<16x1xi1> to vector<16x16xi1>
    %33 = arith.andi %30, %32 : vector<16x16xi1>
    %c0_3 = arith.constant 0 : index
    %c0_4 = arith.constant 0 : index
    %c0_5 = arith.constant 0 : index
    %34 = vector.load %arg3[%c0_3, %c0_4, %c0_5] : memref<2x16x32xf32, #tpu.memory_space<vmem>>, vector<1x16x32xf32>
    %35 = vector.shape_cast %34 : vector<1x16x32xf32> to vector<16x32xf32>
    %c0_6 = arith.constant 0 : index
    %c0_7 = arith.constant 0 : index
    %c0_8 = arith.constant 0 : index
    %36 = vector.load %arg6[%c0_6, %c0_7, %c0_8] : memref<2x32x96xf32, #tpu.memory_space<vmem>>, vector<1x32x96xf32>
    %37 = vector.shape_cast %36 : vector<1x32x96xf32> to vector<32x96xf32>
    %cst_9 = arith.constant dense<0.000000e+00> : vector<16x96xf32>
    %38 = tpu.matmul %35, %37, %cst_9 {dimension_numbers = #tpu.dot_dimension_numbers<[1], [0], [0], [1], [0, 0, 1, 1], [], []>} : vector<16x32xf32>, vector<32x96xf32>, vector<16x96xf32> -> vector<16x96xf32>
    %39 = vector.extract_strided_slice %38 {offsets = [0, 0], sizes = [16, 32], strides = [1, 1]} : vector<16x96xf32> to vector<16x32xf32>
    %40 = vector.extract_strided_slice %38 {offsets = [0, 32], sizes = [16, 32], strides = [1, 1]} : vector<16x96xf32> to vector<16x32xf32>
    %41 = vector.extract_strided_slice %38 {offsets = [0, 64], sizes = [16, 32], strides = [1, 1]} : vector<16x96xf32> to vector<16x32xf32>
    %42 = tpu.transpose %40, [1, 0] : vector<16x32xf32> -> vector<32x16xf32>
    %cst_10 = arith.constant dense<0.000000e+00> : vector<16x16xf32>
    %43 = tpu.matmul %39, %42, %cst_10 {dimension_numbers = #tpu.dot_dimension_numbers<[1], [0], [0], [1], [0, 0, 1, 1], [], []>} : vector<16x32xf32>, vector<32x16xf32>, vector<16x16xf32> -> vector<16x16xf32>
    %cst_11 = arith.constant 0.176776692 : f32
    %44 = vector.broadcast %cst_11 : f32 to vector<16x16xf32>
    %45 = arith.mulf %43, %44 : vector<16x16xf32>
    %cst_12 = arith.constant -1.000000e+09 : f32
    %46 = vector.broadcast %cst_12 : f32 to vector<16x16xf32>
    %47 = arith.select %33, %45, %46 : vector<16x16xi1>, vector<16x16xf32>
    %cst_13 = arith.constant dense<0xFF800000> : vector<16xf32>
    %48 = vector.multi_reduction <maximumf>, %47, %cst_13 [1] : vector<16x16xf32> to vector<16xf32>
    %49 = vector.shape_cast %48 : vector<16xf32> to vector<16x1xf32>
    %50 = vector.broadcast %49 : vector<16x1xf32> to vector<16x16xf32>
    %51 = arith.subf %47, %50 : vector<16x16xf32>
    %52 = math.exp %51 : vector<16x16xf32>
    %cst_14 = arith.constant dense<0.000000e+00> : vector<16xf32>
    %53 = vector.multi_reduction <add>, %52, %cst_14 [1] : vector<16x16xf32> to vector<16xf32>
    %54 = vector.shape_cast %53 : vector<16xf32> to vector<16x1xf32>
    %55 = vector.broadcast %54 : vector<16x1xf32> to vector<16x16xf32>
    %56 = arith.divf %52, %55 : vector<16x16xf32>
    %cst_15 = arith.constant dense<0.000000e+00> : vector<16x32xf32>
    %57 = tpu.matmul %56, %41, %cst_15 {dimension_numbers = #tpu.dot_dimension_numbers<[1], [0], [0], [1], [0, 0, 1, 1], [], []>} : vector<16x16xf32>, vector<16x32xf32>, vector<16x32xf32> -> vector<16x32xf32>
    %c0_16 = arith.constant 0 : index
    %c0_17 = arith.constant 0 : index
    %c0_18 = arith.constant 0 : index
    %58 = vector.load %arg7[%c0_16, %c0_17, %c0_18] : memref<2x32x32xf32, #tpu.memory_space<vmem>>, vector<1x32x32xf32>
    %59 = vector.shape_cast %58 : vector<1x32x32xf32> to vector<32x32xf32>
    %cst_19 = arith.constant dense<0.000000e+00> : vector<16x32xf32>
    %60 = tpu.matmul %57, %59, %cst_19 {dimension_numbers = #tpu.dot_dimension_numbers<[1], [0], [0], [1], [0, 0, 1, 1], [], []>} : vector<16x32xf32>, vector<32x32xf32>, vector<16x32xf32> -> vector<16x32xf32>
    %61 = arith.addf %60, %35 : vector<16x32xf32>
    %c0_20 = arith.constant 0 : index
    %c0_21 = arith.constant 0 : index
    %c0_22 = arith.constant 0 : index
    %62 = vector.load %arg8[%c0_20, %c0_21, %c0_22] : memref<2x32x64xf32, #tpu.memory_space<vmem>>, vector<1x32x64xf32>
    %63 = vector.shape_cast %62 : vector<1x32x64xf32> to vector<32x64xf32>
    %cst_23 = arith.constant dense<0.000000e+00> : vector<16x64xf32>
    %64 = tpu.matmul %61, %63, %cst_23 {dimension_numbers = #tpu.dot_dimension_numbers<[1], [0], [0], [1], [0, 0, 1, 1], [], []>} : vector<16x32xf32>, vector<32x64xf32>, vector<16x64xf32> -> vector<16x64xf32>
    %cst_24 = arith.constant 0.000000e+00 : f32
    %65 = vector.broadcast %cst_24 : f32 to vector<16x64xf32>
    %66 = arith.maximumf %64, %65 : vector<16x64xf32>
    %c0_25 = arith.constant 0 : index
    %c0_26 = arith.constant 0 : index
    %c0_27 = arith.constant 0 : index
    %67 = vector.load %arg9[%c0_25, %c0_26, %c0_27] : memref<2x64x32xf32, #tpu.memory_space<vmem>>, vector<1x64x32xf32>
    %68 = vector.shape_cast %67 : vector<1x64x32xf32> to vector<64x32xf32>
    %cst_28 = arith.constant dense<0.000000e+00> : vector<16x32xf32>
    %69 = tpu.matmul %66, %68, %cst_28 {dimension_numbers = #tpu.dot_dimension_numbers<[1], [0], [0], [1], [0, 0, 1, 1], [], []>} : vector<16x64xf32>, vector<64x32xf32>, vector<16x32xf32> -> vector<16x32xf32>
    %70 = arith.addf %69, %61 : vector<16x32xf32>
    %c0_29 = arith.constant 0 : index
    %c0_30 = arith.constant 0 : index
    %c0_31 = arith.constant 0 : index
    %71 = vector.load %arg10[%c0_29, %c0_30, %c0_31] : memref<2x32x8xf32, #tpu.memory_space<vmem>>, vector<1x32x8xf32>
    %72 = vector.shape_cast %71 : vector<1x32x8xf32> to vector<32x8xf32>
    %cst_32 = arith.constant dense<0.000000e+00> : vector<16x8xf32>
    %73 = tpu.matmul %70, %72, %cst_32 {dimension_numbers = #tpu.dot_dimension_numbers<[1], [0], [0], [1], [0, 0, 1, 1], [], []>} : vector<16x32xf32>, vector<32x8xf32>, vector<16x8xf32> -> vector<16x8xf32>
    %c0_33 = arith.constant 0 : index
    %c0_34 = arith.constant 0 : index
    %c0_35 = arith.constant 0 : index
    %74 = vector.load %arg11[%c0_33, %c0_34, %c0_35] : memref<2x1x8xf32, #tpu.memory_space<vmem>>, vector<1x1x8xf32>
    %75 = vector.shape_cast %74 : vector<1x1x8xf32> to vector<1x8xf32>
    %76 = vector.broadcast %75 : vector<1x8xf32> to vector<16x8xf32>
    %77 = arith.addf %73, %76 : vector<16x8xf32>
    %78 = vector.extract_strided_slice %77 {offsets = [0, 0], sizes = [16, 4], strides = [1, 1]} : vector<16x8xf32> to vector<16x4xf32>
    %79 = vector.extract_strided_slice %77 {offsets = [0, 4], sizes = [16, 4], strides = [1, 1]} : vector<16x8xf32> to vector<16x4xf32>
    %cst_36 = arith.constant 0.000000e+00 : f32
    %80 = vector.broadcast %cst_36 : f32 to vector<16x4xf32>
    %81 = arith.maximumf %78, %80 : vector<16x4xf32>
    %82 = math.absf %78 : vector<16x4xf32>
    %cst_37 = arith.constant 0.000000e+00 : f32
    %83 = vector.broadcast %cst_37 : f32 to vector<16x4xf32>
    %84 = arith.subf %83, %82 : vector<16x4xf32>
    %85 = math.exp %84 : vector<16x4xf32>
    %86 = math.log1p %85 : vector<16x4xf32>
    %87 = arith.addf %81, %86 : vector<16x4xf32>
    %cst_38 = arith.constant dense<0.000000e+00> : vector<16xf32>
    %88 = vector.multi_reduction <add>, %87, %cst_38 [1] : vector<16x4xf32> to vector<16xf32>
    %89 = vector.shape_cast %88 : vector<16xf32> to vector<16x1xf32>
    %cst_39 = arith.constant dense<0xFF800000> : vector<16xf32>
    %90 = vector.multi_reduction <maximumf>, %79, %cst_39 [1] : vector<16x4xf32> to vector<16xf32>
    %91 = vector.shape_cast %90 : vector<16xf32> to vector<16x1xf32>
    %92 = vector.broadcast %91 : vector<16x1xf32> to vector<16x4xf32>
    %93 = arith.subf %79, %92 : vector<16x4xf32>
    %94 = math.exp %93 : vector<16x4xf32>
    %cst_40 = arith.constant dense<0.000000e+00> : vector<16xf32>
    %95 = vector.multi_reduction <add>, %94, %cst_40 [1] : vector<16x4xf32> to vector<16xf32>
    %96 = vector.shape_cast %95 : vector<16xf32> to vector<16x1xf32>
    %97 = math.log %96 : vector<16x1xf32>
    %98 = arith.addf %91, %97 : vector<16x1xf32>
    %99 = vector.broadcast %98 : vector<16x1xf32> to vector<16x4xf32>
    %100 = arith.subf %79, %99 : vector<16x4xf32>
    %cst_41 = arith.constant 9.99999971E-10 : f32
    %101 = vector.broadcast %cst_41 : f32 to vector<16x1xf32>
    %102 = arith.addf %89, %101 : vector<16x1xf32>
    %103 = math.log %102 : vector<16x1xf32>
    %104 = arith.mulf %89, %4 : vector<16x1xf32>
    %105 = arith.subf %103, %104 : vector<16x1xf32>
    %106 = arith.mulf %13, %105 : vector<16x1xf32>
    %107 = vector.shape_cast %106 : vector<16x1xf32> to vector<1x16x1xf32>
    %cst_42 = arith.constant dense<0.000000e+00> : vector<1xf32>
    %108 = vector.multi_reduction <add>, %107, %cst_42 [1, 2] : vector<1x16x1xf32> to vector<1xf32>
    %109 = vector.shape_cast %108 : vector<1xf32> to vector<1x1x1xf32>
    %110 = vector.extract %109[0, 0, 0] : f32 from vector<1x1x1xf32>
    %111 = arith.mulf %5, %100 : vector<16x4xf32>
    %cst_43 = arith.constant dense<0.000000e+00> : vector<16xf32>
    %112 = vector.multi_reduction <add>, %111, %cst_43 [1] : vector<16x4xf32> to vector<16xf32>
    %113 = vector.shape_cast %112 : vector<16xf32> to vector<16x1xf32>
    %114 = arith.mulf %21, %113 : vector<16x1xf32>
    %115 = vector.shape_cast %114 : vector<16x1xf32> to vector<1x16x1xf32>
    %cst_44 = arith.constant dense<0.000000e+00> : vector<1xf32>
    %116 = vector.multi_reduction <add>, %115, %cst_44 [1, 2] : vector<1x16x1xf32> to vector<1xf32>
    %117 = vector.shape_cast %116 : vector<1xf32> to vector<1x1x1xf32>
    %118 = vector.extract %117[0, 0, 0] : f32 from vector<1x1x1xf32>
    %119 = arith.addf %110, %118 : f32
    %cst_45 = arith.constant 0.000000e+00 : f32
    %120 = arith.subf %cst_45, %119 : f32
    %c1 = arith.constant 1 : index
    %c0_46 = arith.constant 0 : index
    %c0_47 = arith.constant 0 : index
    %121 = vector.load %arg3[%c1, %c0_46, %c0_47] : memref<2x16x32xf32, #tpu.memory_space<vmem>>, vector<1x16x32xf32>
    %122 = vector.shape_cast %121 : vector<1x16x32xf32> to vector<16x32xf32>
    %c1_48 = arith.constant 1 : index
    %c0_49 = arith.constant 0 : index
    %c0_50 = arith.constant 0 : index
    %123 = vector.load %arg6[%c1_48, %c0_49, %c0_50] : memref<2x32x96xf32, #tpu.memory_space<vmem>>, vector<1x32x96xf32>
    %124 = vector.shape_cast %123 : vector<1x32x96xf32> to vector<32x96xf32>
    %cst_51 = arith.constant dense<0.000000e+00> : vector<16x96xf32>
    %125 = tpu.matmul %122, %124, %cst_51 {dimension_numbers = #tpu.dot_dimension_numbers<[1], [0], [0], [1], [0, 0, 1, 1], [], []>} : vector<16x32xf32>, vector<32x96xf32>, vector<16x96xf32> -> vector<16x96xf32>
    %126 = vector.extract_strided_slice %125 {offsets = [0, 0], sizes = [16, 32], strides = [1, 1]} : vector<16x96xf32> to vector<16x32xf32>
    %127 = vector.extract_strided_slice %125 {offsets = [0, 32], sizes = [16, 32], strides = [1, 1]} : vector<16x96xf32> to vector<16x32xf32>
    %128 = vector.extract_strided_slice %125 {offsets = [0, 64], sizes = [16, 32], strides = [1, 1]} : vector<16x96xf32> to vector<16x32xf32>
    %129 = tpu.transpose %127, [1, 0] : vector<16x32xf32> -> vector<32x16xf32>
    %cst_52 = arith.constant dense<0.000000e+00> : vector<16x16xf32>
    %130 = tpu.matmul %126, %129, %cst_52 {dimension_numbers = #tpu.dot_dimension_numbers<[1], [0], [0], [1], [0, 0, 1, 1], [], []>} : vector<16x32xf32>, vector<32x16xf32>, vector<16x16xf32> -> vector<16x16xf32>
    %cst_53 = arith.constant 0.176776692 : f32
    %131 = vector.broadcast %cst_53 : f32 to vector<16x16xf32>
    %132 = arith.mulf %130, %131 : vector<16x16xf32>
    %cst_54 = arith.constant -1.000000e+09 : f32
    %133 = vector.broadcast %cst_54 : f32 to vector<16x16xf32>
    %134 = arith.select %33, %132, %133 : vector<16x16xi1>, vector<16x16xf32>
    %cst_55 = arith.constant dense<0xFF800000> : vector<16xf32>
    %135 = vector.multi_reduction <maximumf>, %134, %cst_55 [1] : vector<16x16xf32> to vector<16xf32>
    %136 = vector.shape_cast %135 : vector<16xf32> to vector<16x1xf32>
    %137 = vector.broadcast %136 : vector<16x1xf32> to vector<16x16xf32>
    %138 = arith.subf %134, %137 : vector<16x16xf32>
    %139 = math.exp %138 : vector<16x16xf32>
    %cst_56 = arith.constant dense<0.000000e+00> : vector<16xf32>
    %140 = vector.multi_reduction <add>, %139, %cst_56 [1] : vector<16x16xf32> to vector<16xf32>
    %141 = vector.shape_cast %140 : vector<16xf32> to vector<16x1xf32>
    %142 = vector.broadcast %141 : vector<16x1xf32> to vector<16x16xf32>
    %143 = arith.divf %139, %142 : vector<16x16xf32>
    %cst_57 = arith.constant dense<0.000000e+00> : vector<16x32xf32>
    %144 = tpu.matmul %143, %128, %cst_57 {dimension_numbers = #tpu.dot_dimension_numbers<[1], [0], [0], [1], [0, 0, 1, 1], [], []>} : vector<16x16xf32>, vector<16x32xf32>, vector<16x32xf32> -> vector<16x32xf32>
    %c1_58 = arith.constant 1 : index
    %c0_59 = arith.constant 0 : index
    %c0_60 = arith.constant 0 : index
    %145 = vector.load %arg7[%c1_58, %c0_59, %c0_60] : memref<2x32x32xf32, #tpu.memory_space<vmem>>, vector<1x32x32xf32>
    %146 = vector.shape_cast %145 : vector<1x32x32xf32> to vector<32x32xf32>
    %cst_61 = arith.constant dense<0.000000e+00> : vector<16x32xf32>
    %147 = tpu.matmul %144, %146, %cst_61 {dimension_numbers = #tpu.dot_dimension_numbers<[1], [0], [0], [1], [0, 0, 1, 1], [], []>} : vector<16x32xf32>, vector<32x32xf32>, vector<16x32xf32> -> vector<16x32xf32>
    %148 = arith.addf %147, %122 : vector<16x32xf32>
    %c1_62 = arith.constant 1 : index
    %c0_63 = arith.constant 0 : index
    %c0_64 = arith.constant 0 : index
    %149 = vector.load %arg8[%c1_62, %c0_63, %c0_64] : memref<2x32x64xf32, #tpu.memory_space<vmem>>, vector<1x32x64xf32>
    %150 = vector.shape_cast %149 : vector<1x32x64xf32> to vector<32x64xf32>
    %cst_65 = arith.constant dense<0.000000e+00> : vector<16x64xf32>
    %151 = tpu.matmul %148, %150, %cst_65 {dimension_numbers = #tpu.dot_dimension_numbers<[1], [0], [0], [1], [0, 0, 1, 1], [], []>} : vector<16x32xf32>, vector<32x64xf32>, vector<16x64xf32> -> vector<16x64xf32>
    %cst_66 = arith.constant 0.000000e+00 : f32
    %152 = vector.broadcast %cst_66 : f32 to vector<16x64xf32>
    %153 = arith.maximumf %151, %152 : vector<16x64xf32>
    %c1_67 = arith.constant 1 : index
    %c0_68 = arith.constant 0 : index
    %c0_69 = arith.constant 0 : index
    %154 = vector.load %arg9[%c1_67, %c0_68, %c0_69] : memref<2x64x32xf32, #tpu.memory_space<vmem>>, vector<1x64x32xf32>
    %155 = vector.shape_cast %154 : vector<1x64x32xf32> to vector<64x32xf32>
    %cst_70 = arith.constant dense<0.000000e+00> : vector<16x32xf32>
    %156 = tpu.matmul %153, %155, %cst_70 {dimension_numbers = #tpu.dot_dimension_numbers<[1], [0], [0], [1], [0, 0, 1, 1], [], []>} : vector<16x64xf32>, vector<64x32xf32>, vector<16x32xf32> -> vector<16x32xf32>
    %157 = arith.addf %156, %148 : vector<16x32xf32>
    %c1_71 = arith.constant 1 : index
    %c0_72 = arith.constant 0 : index
    %c0_73 = arith.constant 0 : index
    %158 = vector.load %arg10[%c1_71, %c0_72, %c0_73] : memref<2x32x8xf32, #tpu.memory_space<vmem>>, vector<1x32x8xf32>
    %159 = vector.shape_cast %158 : vector<1x32x8xf32> to vector<32x8xf32>
    %cst_74 = arith.constant dense<0.000000e+00> : vector<16x8xf32>
    %160 = tpu.matmul %157, %159, %cst_74 {dimension_numbers = #tpu.dot_dimension_numbers<[1], [0], [0], [1], [0, 0, 1, 1], [], []>} : vector<16x32xf32>, vector<32x8xf32>, vector<16x8xf32> -> vector<16x8xf32>
    %c1_75 = arith.constant 1 : index
    %c0_76 = arith.constant 0 : index
    %c0_77 = arith.constant 0 : index
    %161 = vector.load %arg11[%c1_75, %c0_76, %c0_77] : memref<2x1x8xf32, #tpu.memory_space<vmem>>, vector<1x1x8xf32>
    %162 = vector.shape_cast %161 : vector<1x1x8xf32> to vector<1x8xf32>
    %163 = vector.broadcast %162 : vector<1x8xf32> to vector<16x8xf32>
    %164 = arith.addf %160, %163 : vector<16x8xf32>
    %165 = vector.extract_strided_slice %164 {offsets = [0, 0], sizes = [16, 4], strides = [1, 1]} : vector<16x8xf32> to vector<16x4xf32>
    %166 = vector.extract_strided_slice %164 {offsets = [0, 4], sizes = [16, 4], strides = [1, 1]} : vector<16x8xf32> to vector<16x4xf32>
    %cst_78 = arith.constant 0.000000e+00 : f32
    %167 = vector.broadcast %cst_78 : f32 to vector<16x4xf32>
    %168 = arith.maximumf %165, %167 : vector<16x4xf32>
    %169 = math.absf %165 : vector<16x4xf32>
    %cst_79 = arith.constant 0.000000e+00 : f32
    %170 = vector.broadcast %cst_79 : f32 to vector<16x4xf32>
    %171 = arith.subf %170, %169 : vector<16x4xf32>
    %172 = math.exp %171 : vector<16x4xf32>
    %173 = math.log1p %172 : vector<16x4xf32>
    %174 = arith.addf %168, %173 : vector<16x4xf32>
    %cst_80 = arith.constant dense<0.000000e+00> : vector<16xf32>
    %175 = vector.multi_reduction <add>, %174, %cst_80 [1] : vector<16x4xf32> to vector<16xf32>
    %176 = vector.shape_cast %175 : vector<16xf32> to vector<16x1xf32>
    %cst_81 = arith.constant dense<0xFF800000> : vector<16xf32>
    %177 = vector.multi_reduction <maximumf>, %166, %cst_81 [1] : vector<16x4xf32> to vector<16xf32>
    %178 = vector.shape_cast %177 : vector<16xf32> to vector<16x1xf32>
    %179 = vector.broadcast %178 : vector<16x1xf32> to vector<16x4xf32>
    %180 = arith.subf %166, %179 : vector<16x4xf32>
    %181 = math.exp %180 : vector<16x4xf32>
    %cst_82 = arith.constant dense<0.000000e+00> : vector<16xf32>
    %182 = vector.multi_reduction <add>, %181, %cst_82 [1] : vector<16x4xf32> to vector<16xf32>
    %183 = vector.shape_cast %182 : vector<16xf32> to vector<16x1xf32>
    %184 = math.log %183 : vector<16x1xf32>
    %185 = arith.addf %178, %184 : vector<16x1xf32>
    %186 = vector.broadcast %185 : vector<16x1xf32> to vector<16x4xf32>
    %187 = arith.subf %166, %186 : vector<16x4xf32>
    %cst_83 = arith.constant 9.99999971E-10 : f32
    %188 = vector.broadcast %cst_83 : f32 to vector<16x1xf32>
    %189 = arith.addf %176, %188 : vector<16x1xf32>
    %190 = math.log %189 : vector<16x1xf32>
    %191 = arith.mulf %176, %4 : vector<16x1xf32>
    %192 = arith.subf %190, %191 : vector<16x1xf32>
    %193 = arith.mulf %13, %192 : vector<16x1xf32>
    %194 = vector.shape_cast %193 : vector<16x1xf32> to vector<1x16x1xf32>
    %cst_84 = arith.constant dense<0.000000e+00> : vector<1xf32>
    %195 = vector.multi_reduction <add>, %194, %cst_84 [1, 2] : vector<1x16x1xf32> to vector<1xf32>
    %196 = vector.shape_cast %195 : vector<1xf32> to vector<1x1x1xf32>
    %197 = vector.extract %196[0, 0, 0] : f32 from vector<1x1x1xf32>
    %198 = arith.mulf %5, %187 : vector<16x4xf32>
    %cst_85 = arith.constant dense<0.000000e+00> : vector<16xf32>
    %199 = vector.multi_reduction <add>, %198, %cst_85 [1] : vector<16x4xf32> to vector<16xf32>
    %200 = vector.shape_cast %199 : vector<16xf32> to vector<16x1xf32>
    %201 = arith.mulf %21, %200 : vector<16x1xf32>
    %202 = vector.shape_cast %201 : vector<16x1xf32> to vector<1x16x1xf32>
    %cst_86 = arith.constant dense<0.000000e+00> : vector<1xf32>
    %203 = vector.multi_reduction <add>, %202, %cst_86 [1, 2] : vector<1x16x1xf32> to vector<1xf32>
    %204 = vector.shape_cast %203 : vector<1xf32> to vector<1x1x1xf32>
    %205 = vector.extract %204[0, 0, 0] : f32 from vector<1x1x1xf32>
    %206 = arith.addf %197, %205 : f32
    %cst_87 = arith.constant 0.000000e+00 : f32
    %207 = arith.subf %cst_87, %206 : f32
    %208 = arith.subf %120, %207 : f32
    %209 = tpu.iota {dimensions = array<i32: 1>} : vector<1x8x128xi32>
    %210 = tpu.iota {dimensions = array<i32: 2>} : vector<1x8x128xi32>
    %c0_i32 = arith.constant 0 : i32
    %211 = vector.broadcast %c0_i32 : i32 to vector<1x8x128xi32>
    %212 = arith.cmpi eq, %209, %211 : vector<1x8x128xi32>
    %c0_i32_88 = arith.constant 0 : i32
    %213 = vector.broadcast %c0_i32_88 : i32 to vector<1x8x128xi32>
    %214 = arith.cmpi eq, %210, %213 : vector<1x8x128xi32>
    %215 = arith.andi %212, %214 : vector<1x8x128xi1>
    %c0_i32_89 = arith.constant 0 : i32
    %216 = vector.broadcast %c0_i32_89 : i32 to vector<1x8x128xi32>
    %217 = arith.cmpi eq, %209, %216 : vector<1x8x128xi32>
    %c1_i32_90 = arith.constant 1 : i32
    %218 = vector.broadcast %c1_i32_90 : i32 to vector<1x8x128xi32>
    %219 = arith.cmpi eq, %210, %218 : vector<1x8x128xi32>
    %220 = arith.andi %217, %219 : vector<1x8x128xi1>
    %c0_i32_91 = arith.constant 0 : i32
    %221 = vector.broadcast %c0_i32_91 : i32 to vector<1x8x128xi32>
    %222 = arith.cmpi eq, %209, %221 : vector<1x8x128xi32>
    %c2_i32 = arith.constant 2 : i32
    %223 = vector.broadcast %c2_i32 : i32 to vector<1x8x128xi32>
    %224 = arith.cmpi eq, %210, %223 : vector<1x8x128xi32>
    %225 = arith.andi %222, %224 : vector<1x8x128xi1>
    %cst_92 = arith.constant 0.000000e+00 : f32
    %226 = vector.broadcast %207 : f32 to vector<1x8x128xf32>
    %227 = vector.broadcast %cst_92 : f32 to vector<1x8x128xf32>
    %228 = arith.select %225, %226, %227 : vector<1x8x128xi1>, vector<1x8x128xf32>
    %229 = vector.broadcast %120 : f32 to vector<1x8x128xf32>
    %230 = arith.select %220, %229, %228 : vector<1x8x128xi1>, vector<1x8x128xf32>
    %231 = vector.broadcast %208 : f32 to vector<1x8x128xf32>
    %232 = arith.select %215, %231, %230 : vector<1x8x128xi1>, vector<1x8x128xf32>
    %c0_93 = arith.constant 0 : index
    %c0_94 = arith.constant 0 : index
    %c0_95 = arith.constant 0 : index
    %233 = vector.load %arg12[%c0_93, %c0_94, %c0_95] : memref<1x8x128xf32, #tpu.memory_space<vmem>>, vector<1x8x128xf32>
    tpu.vector_store %arg12[%c0_93, %c0_94, %c0_95], %232 {strides = array<i32>} : memref<1x8x128xf32, #tpu.memory_space<vmem>>, vector<1x8x128xf32>,
    return
  }
  func.func @transform_0(%arg0: i32, %arg1: memref<3xi32, #tpu.memory_space<smem>>, %arg2: memref<3xi32, #tpu.memory_space<smem>>) -> (i32, i32, i32) {
    %c0_i32 = arith.constant 0 : i32
    %c0_i32_0 = arith.constant 0 : i32
    %c0_i32_1 = arith.constant 0 : i32
    %c0_i32_2 = arith.constant 0 : i32
    return %c0_i32, %c0_i32_0, %c0_i32_1 : i32, i32, i32
  }
  func.func @transform_1(%arg0: i32, %arg1: memref<3xi32, #tpu.memory_space<smem>>, %arg2: memref<3xi32, #tpu.memory_space<smem>>) -> (i32, i32) {
    %c0_i32 = arith.constant 0 : i32
    %c0_i32_0 = arith.constant 0 : i32
    %c0_i32_1 = arith.constant 0 : i32
    return %c0_i32, %c0_i32_0 : i32, i32
  }
  func.func @transform_2(%arg0: i32, %arg1: memref<3xi32, #tpu.memory_space<smem>>, %arg2: memref<3xi32, #tpu.memory_space<smem>>) -> (i32, i32) {
    %c0_i32 = arith.constant 0 : i32
    %c0_i32_0 = arith.constant 0 : i32
    %c0_i32_1 = arith.constant 0 : i32
    return %c0_i32, %c0_i32_0 : i32, i32
  }
  func.func @transform_3(%arg0: i32, %arg1: memref<3xi32, #tpu.memory_space<smem>>, %arg2: memref<3xi32, #tpu.memory_space<smem>>) -> (i32, i32, i32) {
    %c0_i32 = arith.constant 0 : i32
    %c0_i32_0 = arith.constant 0 : i32
    %c0_i32_1 = arith.constant 0 : i32
    %c0_i32_2 = arith.constant 0 : i32
    return %c0_i32, %c0_i32_0, %c0_i32_1 : i32, i32, i32
  }
  func.func @transform_4(%arg0: i32, %arg1: memref<3xi32, #tpu.memory_space<smem>>, %arg2: memref<3xi32, #tpu.memory_space<smem>>) -> (i32, i32, i32) {
    %c0_i32 = arith.constant 0 : i32
    %c0_i32_0 = arith.constant 0 : i32
    %c0_i32_1 = arith.constant 0 : i32
    %c0_i32_2 = arith.constant 0 : i32
    return %c0_i32, %c0_i32_0, %c0_i32_1 : i32, i32, i32
  }
  func.func @transform_5(%arg0: i32, %arg1: memref<3xi32, #tpu.memory_space<smem>>, %arg2: memref<3xi32, #tpu.memory_space<smem>>) -> (i32, i32, i32) {
    %c0_i32 = arith.constant 0 : i32
    %c0_i32_0 = arith.constant 0 : i32
    %c0_i32_1 = arith.constant 0 : i32
    %c0_i32_2 = arith.constant 0 : i32
    return %c0_i32, %c0_i32_0, %c0_i32_1 : i32, i32, i32
  }
  func.func @transform_6(%arg0: i32, %arg1: memref<3xi32, #tpu.memory_space<smem>>, %arg2: memref<3xi32, #tpu.memory_space<smem>>) -> (i32, i32, i32) {
    %c0_i32 = arith.constant 0 : i32
    %c0_i32_0 = arith.constant 0 : i32
    %c0_i32_1 = arith.constant 0 : i32
    %c0_i32_2 = arith.constant 0 : i32
    return %c0_i32, %c0_i32_0, %c0_i32_1 : i32, i32, i32
  }
  func.func @transform_7(%arg0: i32, %arg1: memref<3xi32, #tpu.memory_space<smem>>, %arg2: memref<3xi32, #tpu.memory_space<smem>>) -> (i32, i32, i32) {
    %c0_i32 = arith.constant 0 : i32
    %c0_i32_0 = arith.constant 0 : i32
    %c0_i32_1 = arith.constant 0 : i32
    %c0_i32_2 = arith.constant 0 : i32
    return %c0_i32, %c0_i32_0, %c0_i32_1 : i32, i32, i32
  }
  func.func @transform_8(%arg0: i32, %arg1: memref<3xi32, #tpu.memory_space<smem>>, %arg2: memref<3xi32, #tpu.memory_space<smem>>) -> (i32, i32, i32) {
    %c0_i32 = arith.constant 0 : i32
    %c0_i32_0 = arith.constant 0 : i32
    %c0_i32_1 = arith.constant 0 : i32
    %c0_i32_2 = arith.constant 0 : i32
    return %c0_i32, %c0_i32_0, %c0_i32_1 : i32, i32, i32
  }
  func.func @transform_9(%arg0: i32, %arg1: memref<3xi32, #tpu.memory_space<smem>>, %arg2: memref<3xi32, #tpu.memory_space<smem>>) -> (i32, i32, i32) {
    %c0_i32 = arith.constant 0 : i32
    %c0_i32_0 = arith.constant 0 : i32
    %c0_i32_1 = arith.constant 0 : i32
    return %arg0, %c0_i32, %c0_i32_0 : i32, i32, i32
  }
}

</mosaic_0001>

<llo_original>
// kernel: tpu_custom_call.1
$region0: #{tpu_custom_call.1}
  #allocation0 [shape = 'u32[]', space=smem, size = 0x4, offset = 0x4, fixed_abs, tag = 'smem constant byte address 0x4 - core index']
  #allocation1 [shape = 'u32[72,128]{1,0:T(1,128)}', space=vmem, size = 0x9000, scoped, tag = 'internal scratch']
  #allocation2 [shape = 's32[1]{0}', space=sflag, size = 0x4, scoped, tag = 'scoped memory for tpu_custom_call.1']
  #allocation3 [shape = 'u8[512]{0}', space=smem, size = 0x200, scoped, tag = 'prefetched SMEM operand 0']
  #allocation4 [shape = 'u8[512]{0}', space=smem, size = 0x200, scoped, tag = 'prefetched SMEM operand 1']
  %s0 = inlined_call_operand.vmem [shape: s32[3], index: 0, kind: input, shape index: {}]
  %s1 = inlined_call_operand.vmem [shape: s32[3], index: 1, kind: input, shape index: {}]
  %s2 = inlined_call_operand.vmem [shape: f32[2,16,32], index: 2, kind: input, shape index: {}]
  %s3 = inlined_call_operand.vmem [shape: f32[16,1], index: 3, kind: input, shape index: {}]
  %s4 = inlined_call_operand.vmem [shape: f32[16,4], index: 4, kind: input, shape index: {}]
  %s5 = inlined_call_operand.vmem [shape: f32[2,32,96], index: 5, kind: input, shape index: {}]
  %s6 = inlined_call_operand.vmem [shape: f32[2,32,32], index: 6, kind: input, shape index: {}]
  %s7 = inlined_call_operand.vmem [shape: f32[2,32,64], index: 7, kind: input, shape index: {}]
  %s8 = inlined_call_operand.vmem [shape: f32[2,64,32], index: 8, kind: input, shape index: {}]
  %s9 = inlined_call_operand.vmem [shape: f32[2,32,8], index: 9, kind: input, shape index: {}]
  %s10 = inlined_call_operand.vmem [shape: f32[2,1,8], index: 10, kind: input, shape index: {}]
  %s11 = inlined_call_operand.hbm [shape: f32[3,8,128], index: 11, kind: output, shape index: {}]
  %s12 = sld [smem:[#allocation0]]
  $region69: #{tpu_custom_call.1} parent=0
    _
  %s14 = ssub.s32 1, %s12
  %s15 = scalar_select 0, %s14, %s12
  %s17 = sshll.u32 %s0, 4
  %s18 = int_to_ptr.vmem [resolvable:$true] %s17
  %20 = dma.vmem_to_smem %s18, 16, [#allocation3], [#allocation2]
  %s22 = sshll.u32 %s1, 4
  %s23 = int_to_ptr.vmem [resolvable:$true] %s22
  %25 = dma.vmem_to_smem %s23, 16, [#allocation4], [#allocation2]
  %27 = dma.done [#allocation2], 32
  %28 = sfence
  $region1: #{tpu_custom_call.1} parent=0
    #allocation5 [shape = 'u8[8192]{0}', space=vmem, size = 0x2000, scoped, tag = 'output window, operand 0']
    #allocation6 [shape = 's32[2]{0}', space=sflag, size = 0x8, scoped, tag = 'scoped memory for tpu_custom_call.1']
    %29 = vsyncpa [#allocation6], 0
    %s30 = scalar_lea.sflag [#allocation6], 1
    %31 = vsyncpa %s30, 0
    loop: start=0, step=1, limit=5
    $region2: #{tpu_custom_call.1} parent=1 // loop_pre_header
      _
    $region3: #{tpu_custom_call.1} parent=1 // loop_header
      %s33 = sphi 0, %s37
      %p34 = scmp.ge.s32.totalorder %s33, 5
      %s41 = sphi 0, %s41
      %s43 = sphi 0, %s41
      %s44 = sphi 0, %s43
      %s58 = sphi 0, %s44
      %s62 = sphi 0, %s62
      %s64 = sphi 0, %s62
      %s65 = sphi 0, %s64
      %s79 = sphi 0, %s65
      %s83 = sphi 0, %s83
      %s85 = sphi 0, %s83
      %s86 = sphi 0, %s85
      %s100 = sphi 0, %s86
      %s104 = sphi 0, %s104
      %s106 = sphi 0, %s104
      %s107 = sphi 0, %s106
      %s121 = sphi 0, %s107
      %s125 = sphi 0, %s125
      %s127 = sphi 0, %s125
      %s128 = sphi 0, %s127
      %s142 = sphi 0, %s128
      %s146 = sphi 0, %s146
      %s148 = sphi 0, %s146
      %s149 = sphi 0, %s148
      %s163 = sphi 0, %s149
      %s167 = sphi 0, %s167
      %s169 = sphi 0, %s167
      %s170 = sphi 0, %s169
      %s184 = sphi 0, %s170
      %s188 = sphi 0, %s188
      %s190 = sphi 0, %s188
      %s191 = sphi 0, %s190
      %s205 = sphi 0, %s191
      %s209 = sphi 0, %s209
      %s211 = sphi 0, %s209
      %s212 = sphi 0, %s211
      %s226 = sphi 0, %s212
      %s232 = sphi 0, %s234
      %s235 = sphi 0, %s232
      %s236 = sphi 0, %s235
      %s252 = sphi 0, %s236
    $region4: #{tpu_custom_call.1} parent=1 // loop_header_branch
      %36 = sbr.rel (%p34) target = $region8
    $region5: #{tpu_custom_call.1} parent=1 // loop_body
      %s38 = ssub.s32 %s33, 1
      %s39 = ssub.s32 %s33, 2
      %s40 = sadd.s32 %s33, 1
      %s42 = sadd.s32 %s41, 1
      %p45 = scmp.eq.s32.totalorder %s33, 2
      %p46 = scmp.ne.s32.totalorder %s41, %s43
      %p47 = scmp.eq.s32.totalorder %s33, 0
      %p48 = por %p46, %p47
      %p49 = scmp.ne.s32.totalorder %s41, %s43
      %p50 = scmp.eq.s32.totalorder %s38, 2
      %p51 = por %p49, %p50
      %p52 = scmp.ne.s32.totalorder %s43, %s44
      %p53 = scmp.eq.s32.totalorder %s38, 0
      %p54 = por %p52, %p53
      %p55 = scmp.ne.s32.totalorder %s43, %s44
      %p56 = scmp.eq.s32.totalorder %s39, 2
      %p57 = por %p55, %p56
      %p59 = scmp.ne.s32.totalorder %s44, %s58
      %p60 = scmp.eq.s32.totalorder %s39, 0
      %p61 = por %p59, %p60
      %s63 = sadd.s32 %s62, 1
      %p66 = scmp.eq.s32.totalorder %s33, 2
      %p67 = scmp.ne.s32.totalorder %s62, %s64
      %p68 = scmp.eq.s32.totalorder %s33, 0
      %p69 = por %p67, %p68
      %p70 = scmp.ne.s32.totalorder %s62, %s64
      %p71 = scmp.eq.s32.totalorder %s38, 2
      %p72 = por %p70, %p71
      %p73 = scmp.ne.s32.totalorder %s64, %s65
      %p74 = scmp.eq.s32.totalorder %s38, 0
      %p75 = por %p73, %p74
      %p76 = scmp.ne.s32.totalorder %s64, %s65
      %p77 = scmp.eq.s32.totalorder %s39, 2
      %p78 = por %p76, %p77
      %p80 = scmp.ne.s32.totalorder %s65, %s79
      %p81 = scmp.eq.s32.totalorder %s39, 0
      %p82 = por %p80, %p81
      %s84 = sadd.s32 %s83, 1
      %p87 = scmp.eq.s32.totalorder %s33, 2
      %p88 = scmp.ne.s32.totalorder %s83, %s85
      %p89 = scmp.eq.s32.totalorder %s33, 0
      %p90 = por %p88, %p89
      %p91 = scmp.ne.s32.totalorder %s83, %s85
      %p92 = scmp.eq.s32.totalorder %s38, 2
      %p93 = por %p91, %p92
      %p94 = scmp.ne.s32.totalorder %s85, %s86
      %p95 = scmp.eq.s32.totalorder %s38, 0
      %p96 = por %p94, %p95
      %p97 = scmp.ne.s32.totalorder %s85, %s86
      %p98 = scmp.eq.s32.totalorder %s39, 2
      %p99 = por %p97, %p98
      %p101 = scmp.ne.s32.totalorder %s86, %s100
      %p102 = scmp.eq.s32.totalorder %s39, 0
      %p103 = por %p101, %p102
      %s105 = sadd.s32 %s104, 1
      %p108 = scmp.eq.s32.totalorder %s33, 2
      %p109 = scmp.ne.s32.totalorder %s104, %s106
      %p110 = scmp.eq.s32.totalorder %s33, 0
      %p111 = por %p109, %p110
      %p112 = scmp.ne.s32.totalorder %s104, %s106
      %p113 = scmp.eq.s32.totalorder %s38, 2
      %p114 = por %p112, %p113
      %p115 = scmp.ne.s32.totalorder %s106, %s107
      %p116 = scmp.eq.s32.totalorder %s38, 0
      %p117 = por %p115, %p116
      %p118 = scmp.ne.s32.totalorder %s106, %s107
      %p119 = scmp.eq.s32.totalorder %s39, 2
      %p120 = por %p118, %p119
      %p122 = scmp.ne.s32.totalorder %s107, %s121
      %p123 = scmp.eq.s32.totalorder %s39, 0
      %p124 = por %p122, %p123
      %s126 = sadd.s32 %s125, 1
      %p129 = scmp.eq.s32.totalorder %s33, 2
      %p130 = scmp.ne.s32.totalorder %s125, %s127
      %p131 = scmp.eq.s32.totalorder %s33, 0
      %p132 = por %p130, %p131
      %p133 = scmp.ne.s32.totalorder %s125, %s127
      %p134 = scmp.eq.s32.totalorder %s38, 2
      %p135 = por %p133, %p134
      %p136 = scmp.ne.s32.totalorder %s127, %s128
      %p137 = scmp.eq.s32.totalorder %s38, 0
      %p138 = por %p136, %p137
      %p139 = scmp.ne.s32.totalorder %s127, %s128
      %p140 = scmp.eq.s32.totalorder %s39, 2
      %p141 = por %p139, %p140
      %p143 = scmp.ne.s32.totalorder %s128, %s142
      %p144 = scmp.eq.s32.totalorder %s39, 0
      %p145 = por %p143, %p144
      %s147 = sadd.s32 %s146, 1
      %p150 = scmp.eq.s32.totalorder %s33, 2
      %p151 = scmp.ne.s32.totalorder %s146, %s148
      %p152 = scmp.eq.s32.totalorder %s33, 0
      %p153 = por %p151, %p152
      %p154 = scmp.ne.s32.totalorder %s146, %s148
      %p155 = scmp.eq.s32.totalorder %s38, 2
      %p156 = por %p154, %p155
      %p157 = scmp.ne.s32.totalorder %s148, %s149
      %p158 = scmp.eq.s32.totalorder %s38, 0
      %p159 = por %p157, %p158
      %p160 = scmp.ne.s32.totalorder %s148, %s149
      %p161 = scmp.eq.s32.totalorder %s39, 2
      %p162 = por %p160, %p161
      %p164 = scmp.ne.s32.totalorder %s149, %s163
      %p165 = scmp.eq.s32.totalorder %s39, 0
      %p166 = por %p164, %p165
      %s168 = sadd.s32 %s167, 1
      %p171 = scmp.eq.s32.totalorder %s33, 2
      %p172 = scmp.ne.s32.totalorder %s167, %s169
      %p173 = scmp.eq.s32.totalorder %s33, 0
      %p174 = por %p172, %p173
      %p175 = scmp.ne.s32.totalorder %s167, %s169
      %p176 = scmp.eq.s32.totalorder %s38, 2
      %p177 = por %p175, %p176
      %p178 = scmp.ne.s32.totalorder %s169, %s170
      %p179 = scmp.eq.s32.totalorder %s38, 0
      %p180 = por %p178, %p179
      %p181 = scmp.ne.s32.totalorder %s169, %s170
      %p182 = scmp.eq.s32.totalorder %s39, 2
      %p183 = por %p181, %p182
      %p185 = scmp.ne.s32.totalorder %s170, %s184
      %p186 = scmp.eq.s32.totalorder %s39, 0
      %p187 = por %p185, %p186
      %s189 = sadd.s32 %s188, 1
      %p192 = scmp.eq.s32.totalorder %s33, 2
      %p193 = scmp.ne.s32.totalorder %s188, %s190
      %p194 = scmp.eq.s32.totalorder %s33, 0
      %p195 = por %p193, %p194
      %p196 = scmp.ne.s32.totalorder %s188, %s190
      %p197 = scmp.eq.s32.totalorder %s38, 2
      %p198 = por %p196, %p197
      %p199 = scmp.ne.s32.totalorder %s190, %s191
      %p200 = scmp.eq.s32.totalorder %s38, 0
      %p201 = por %p199, %p200
      %p202 = scmp.ne.s32.totalorder %s190, %s191
      %p203 = scmp.eq.s32.totalorder %s39, 2
      %p204 = por %p202, %p203
      %p206 = scmp.ne.s32.totalorder %s191, %s205
      %p207 = scmp.eq.s32.totalorder %s39, 0
      %p208 = por %p206, %p207
      %s210 = sadd.s32 %s209, 1
      %p213 = scmp.eq.s32.totalorder %s33, 2
      %p214 = scmp.ne.s32.totalorder %s209, %s211
      %p215 = scmp.eq.s32.totalorder %s33, 0
      %p216 = por %p214, %p215
      %p217 = scmp.ne.s32.totalorder %s209, %s211
      %p218 = scmp.eq.s32.totalorder %s38, 2
      %p219 = por %p217, %p218
      %p220 = scmp.ne.s32.totalorder %s211, %s212
      %p221 = scmp.eq.s32.totalorder %s38, 0
      %p222 = por %p220, %p221
      %p223 = scmp.ne.s32.totalorder %s211, %s212
      %p224 = scmp.eq.s32.totalorder %s39, 2
      %p225 = por %p223, %p224
      %p227 = scmp.ne.s32.totalorder %s212, %s226
      %p228 = scmp.eq.s32.totalorder %s39, 0
      %p229 = por %p227, %p228
      %s230 = ssub.s32 %s33, %s40
      %p231 = scmp.eq.s32.totalorder %s230, 0
      %s233 = sadd.s32 %s232, 1
      %s234 = scalar_select %p231, %s232, %s233
      %p237 = pneg %p231
      %p238 = scmp.eq.s32.totalorder %s33, 2
      %p239 = por %p237, %p238
      %p240 = scmp.ne.s32.totalorder %s232, %s235
      %p241 = scmp.eq.s32.totalorder %s33, 0
      %p242 = por %p240, %p241
      %p243 = scmp.ne.s32.totalorder %s232, %s235
      %p244 = scmp.eq.s32.totalorder %s38, 2
      %p245 = por %p243, %p244
      %p246 = scmp.ne.s32.totalorder %s235, %s236
      %p247 = scmp.eq.s32.totalorder %s38, 0
      %p248 = por %p246, %p247
      %p249 = scmp.ne.s32.totalorder %s235, %s236
      %p250 = scmp.eq.s32.totalorder %s39, 2
      %p251 = por %p249, %p250
      %p253 = scmp.ne.s32.totalorder %s236, %s252
      %p254 = scmp.eq.s32.totalorder %s39, 0
      %p255 = por %p253, %p254
      %p256 = scmp.le.s32.totalorder 1, %s33
      %p257 = scmp.lt.s32.totalorder %s33, 4
      %p258 = pnand %p256, %p257
      %p259 = pneg %p258
      // Predicated region
      $region9: #{tpu_custom_call.1} parent=5 // pred_check
        _
      $region10: #{tpu_custom_call.1} parent=5 // pred_check_branch
        %261 = sbr.rel (%p258) target = $region12
      $region11: #{tpu_custom_call.1} parent=5 // pred_region
        %s262 = ssub.s32 %s33, 1
        // Predicated region
        $region13: #{tpu_custom_call.1} parent=11 // pred_check
          %p263 = pneg %p54
        $region14: #{tpu_custom_call.1} parent=11 // pred_check_branch
          %265 = sbr.rel (%p263) target = $region16
        $region15: #{tpu_custom_call.1} parent=11 // pred_region
          _
        $region16: #{tpu_custom_call.1} parent=11 // pred_fallthru
          _
        // Predicated region
        $region17: #{tpu_custom_call.1} parent=11 // pred_check
          %p266 = pneg %p75
        $region18: #{tpu_custom_call.1} parent=11 // pred_check_branch
          %268 = sbr.rel (%p266) target = $region20
        $region19: #{tpu_custom_call.1} parent=11 // pred_region
          _
        $region20: #{tpu_custom_call.1} parent=11 // pred_fallthru
          _
        // Predicated region
        $region21: #{tpu_custom_call.1} parent=11 // pred_check
          %p269 = pneg %p96
        $region22: #{tpu_custom_call.1} parent=11 // pred_check_branch
          %271 = sbr.rel (%p269) target = $region24
        $region23: #{tpu_custom_call.1} parent=11 // pred_region
          _
        $region24: #{tpu_custom_call.1} parent=11 // pred_fallthru
          _
        // Predicated region
        $region25: #{tpu_custom_call.1} parent=11 // pred_check
          %p272 = pneg %p117
        $region26: #{tpu_custom_call.1} parent=11 // pred_check_branch
          %274 = sbr.rel (%p272) target = $region28
        $region27: #{tpu_custom_call.1} parent=11 // pred_region
          _
        $region28: #{tpu_custom_call.1} parent=11 // pred_fallthru
          _
        // Predicated region
        $region29: #{tpu_custom_call.1} parent=11 // pred_check
          %p275 = pneg %p138
        $region30: #{tpu_custom_call.1} parent=11 // pred_check_branch
          %277 = sbr.rel (%p275) target = $region32
        $region31: #{tpu_custom_call.1} parent=11 // pred_region
          _
        $region32: #{tpu_custom_call.1} parent=11 // pred_fallthru
          _
        // Predicated region
        $region33: #{tpu_custom_call.1} parent=11 // pred_check
          %p278 = pneg %p159
        $region34: #{tpu_custom_call.1} parent=11 // pred_check_branch
          %280 = sbr.rel (%p278) target = $region36
        $region35: #{tpu_custom_call.1} parent=11 // pred_region
          _
        $region36: #{tpu_custom_call.1} parent=11 // pred_fallthru
          _
        // Predicated region
        $region37: #{tpu_custom_call.1} parent=11 // pred_check
          %p281 = pneg %p180
        $region38: #{tpu_custom_call.1} parent=11 // pred_check_branch
          %283 = sbr.rel (%p281) target = $region40
        $region39: #{tpu_custom_call.1} parent=11 // pred_region
          _
        $region40: #{tpu_custom_call.1} parent=11 // pred_fallthru
          _
        // Predicated region
        $region41: #{tpu_custom_call.1} parent=11 // pred_check
          %p284 = pneg %p201
        $region42: #{tpu_custom_call.1} parent=11 // pred_check_branch
          %286 = sbr.rel (%p284) target = $region44
        $region43: #{tpu_custom_call.1} parent=11 // pred_region
          _
        $region44: #{tpu_custom_call.1} parent=11 // pred_fallthru
          _
        // Predicated region
        $region45: #{tpu_custom_call.1} parent=11 // pred_check
          %p287 = pneg %p222
        $region46: #{tpu_custom_call.1} parent=11 // pred_check_branch
          %289 = sbr.rel (%p287) target = $region48
        $region47: #{tpu_custom_call.1} parent=11 // pred_region
          _
        $region48: #{tpu_custom_call.1} parent=11 // pred_fallthru
          _
      $region12: #{tpu_custom_call.1} parent=5 // pred_fallthru
        _
      %p290 = scmp.lt.s32.totalorder %s33, 3
      // Predicated region
      $region49: #{tpu_custom_call.1} parent=5 // pred_check
        %p291 = pneg %p290
      $region50: #{tpu_custom_call.1} parent=5 // pred_check_branch
        %293 = sbr.rel (%p291) target = $region52
      $region51: #{tpu_custom_call.1} parent=5 // pred_region
        _
      $region52: #{tpu_custom_call.1} parent=5 // pred_fallthru
        _
      %p294 = scmp.le.s32.totalorder 1, %s33
      %p295 = scmp.lt.s32.totalorder %s33, 4
      %p296 = pnand %p294, %p295
      %p297 = pneg %p296
      // Predicated region
      $region53: #{tpu_custom_call.1} parent=5 // pred_check
        _
      $region54: #{tpu_custom_call.1} parent=5 // pred_check_branch
        %299 = sbr.rel (%p296) target = $region56
      $region55: #{tpu_custom_call.1} parent=5 // pred_region
        %s300 = ssub.s32 %s33, 1
        %p301 = pneg %p54
        %p302 = pneg %p51
        %p303 = pneg %p75
        %p304 = pneg %p72
        %p305 = pneg %p96
        %p306 = pneg %p93
        %p307 = pneg %p117
        %p308 = pneg %p114
        %p309 = pneg %p138
        %p310 = pneg %p135
        %p311 = pneg %p159
        %p312 = pneg %p156
        %p313 = pneg %p180
        %p314 = pneg %p177
        %p315 = pneg %p201
        %p316 = pneg %p198
        %p317 = pneg %p222
        %p318 = pneg %p219
        %p319 = pneg %p248
        %p320 = pneg %p245
        %s321 = sand.u32 %s235, 1
        %s322 = scalar_lea.sflag [#allocation6], %s321
        %s323 = sand.u32 %s235, 1
        %s324 = smul.addr %s323, 8
        %s325 = scalar_lea.vmem [#allocation5], %s324
        %s326 = sld [smem:[#allocation3 + %s38]]
        %s327 = sld [smem:[#allocation4 + %s38]]
        %v328 = vld [vmem:[%s3] sm:$0xff]
        %v329 = vld [vmem:[%s3 + $0x8] sm:$0xff]
        %v330 = vld [vmem:[%s4] sm:$0xff]
        %v331 = vld [vmem:[%s4 + $0x8] sm:$0xff]
        %v332 = vlaneseq
        %v333 = vshrl.u32 %v332, 7
        %v334 = vadd.s32 %v333, 8
        %v335 = vstv %s326
        %vm336 = vcmp.ge.s32.totalorder %v333, %v335
        %vm337 = vcmp.ge.s32.totalorder %v334, %v335
        %v338 = vstv %s327
        %vm339 = vcmp.lt.s32.totalorder %v333, %v338
        %vm340 = vcmp.lt.s32.totalorder %v334, %v338
        %vm341 = vmand %vm336, %vm339
        %vm342 = vmand %vm337, %vm340
        %v343 = vsel %vm341, 1, 0
        %v344 = vsel %vm342, 1, 0
        %v345 = vcvt.s32.f32 %v343
        %v346 = vcvt.s32.f32 %v344
        %s347 = ssub.s32 %s327, 1
        %v348 = vstv %s347
        %vm349 = vcmp.lt.s32.totalorder %v333, %v348
        %vm350 = vcmp.lt.s32.totalorder %v334, %v348
        %vm351 = vmand %vm336, %vm349
        %vm352 = vmand %vm337, %vm350
        %v353 = vsel %vm351, 1, 0
        %v354 = vsel %vm352, 1, 0
        %v355 = vcvt.s32.f32 %v353
        %v356 = vcvt.s32.f32 %v354
        %v357 = vlaneseq
        %v358 = vand.u32 %v357, 127
        %vm359 = vcmp.gt.f32.partialorder %v345, 0.5
        %vm360 = vcmp.gt.f32.partialorder %v346, 0.5
        %vm361 = vcmp.le.s32.totalorder %v358, %v333
        %vm362 = vcmp.le.s32.totalorder %v358, %v334
        %v363 = vsel %vm359, 1, 0
        %v364 = vsel %vm360, 1, 0
        %vm365 = vcmp.eq.s32.totalorder %v363, 1
        %vm366 = vcmp.eq.s32.totalorder %v364, 1
        %v367 = vsel %vm365, 1, 0
        %v368 = vsel %vm366, 1, 0
        %v369 = vperm.slane %v367, %v358
        %v370 = vadd.s32 %v358, 4294967288
        %v371 = vperm.slane %v368, %v370
        %vm372 = vcmask 130112
        %v373 = vsel %vm372, %v371, %v369
        %vm374 = vcmask 1042434
        %v375 = vsel %vm374, %v373, %v373
        %vm376 = vcmask 1043459
        %v377 = vsel %vm376, %v373, %v375
        %vm378 = vcmask 1044484
        %v379 = vsel %vm378, %v373, %v377
        %vm380 = vcmask 1045509
        %v381 = vsel %vm380, %v373, %v379
        %vm382 = vcmask 1046534
        %v383 = vsel %vm382, %v373, %v381
        %vm384 = vcmask 1047559
        %v385 = vsel %vm384, %v373, %v383
        %vm386 = vcmp.ne.s32.totalorder %v385, 0
        %vm387 = vmand %vm361, %vm386
        %vm388 = vmand %vm362, %vm386
        %vm389 = vmand %vm387, %vm365
        %vm390 = vmand %vm388, %vm366
        %v391 = vld [vmem:[%s2] sm:$0xff]
        %v392 = vld [vmem:[%s2 + $0x8] sm:$0xff]
        %v393 = vld [vmem:[%s5] sm:$0xff]
        %v394 = vld [vmem:[%s5 + $0x8] sm:$0xff]
        %v395 = vld [vmem:[%s5 + $0x10] sm:$0xff]
        %v396 = vld [vmem:[%s5 + $0x18] sm:$0xff]
        %vm397 = vcmask 261120
        %v399 = vsel %vm397, %v391, 0
        %v402 = vsel %vm397, %v392, 0
        %404 = vmatpush.msra.mxu0 0.0
        %405 = vmatpush.msra.mxu0 0.0
        %406 = vmatpush.msra.mxu0 0.0
        %407 = vmatpush.msra.mxu0 0.0
        %408 = vmatpush.msra.mxu0 0.0
        %409 = vmatpush.msra.mxu0 0.0
        %410 = vmatpush.msra.mxu0 0.0
        %411 = vmatpush.msra.mxu0 0.0
        %412 = vmatpush.msra.mxu0 0.0
        %413 = vmatpush.msra.mxu0 0.0
        %414 = vmatpush.msra.mxu0 0.0
        %415 = vmatpush.msra.mxu0 0.0
        %416 = vmatpush.msra.mxu0 %v396
        %417 = vmatpush.msra.mxu0 %v395
        %418 = vmatpush.msra.mxu0 %v394
        %419 = vmatpush.msra.mxu0 %v393
        %420 = vmatmul.f32.gmra.mxu0 %v399
        %v421 = vpop.f32.mrf.mxu0
        %v422 = vadd.f32 0.0, %v421
        %423 = vmatmul.f32.gmra.mxu0 %v402
        %v424 = vpop.f32.mrf.mxu0
        %v425 = vadd.f32 0.0, %v424
        %426 = vdwg.mxu0
        %429 = vrot.lane.b32.xlu0 %v422, 96
        %v430 = vpop.permute.xlu0 %429
        %431 = vrot.lane.b32.xlu0 %v425, 96
        %v432 = vpop.permute.xlu0 %431
        %v433 = vsel %vm397, %v422, 0
        %v435 = vsel %vm397, %v425, 0
        %v437 = vsel %vm397, %v430, 0
        %v439 = vsel %vm397, %v432, 0
        %441 = vmatpush.xpose.msra.mxu0 0.0
        %442 = vmatpush.xpose.msra.mxu0 0.0
        %443 = vmatpush.xpose.msra.mxu0 0.0
        %444 = vmatpush.xpose.msra.mxu0 0.0
        %445 = vmatpush.xpose.msra.mxu0 0.0
        %446 = vmatpush.xpose.msra.mxu0 0.0
        %447 = vmatpush.xpose.msra.mxu0 0.0
        %448 = vmatpush.xpose.msra.mxu0 0.0
        %449 = vmatpush.xpose.msra.mxu0 0.0
        %450 = vmatpush.xpose.msra.mxu0 0.0
        %451 = vmatpush.xpose.msra.mxu0 0.0
        %452 = vmatpush.xpose.msra.mxu0 0.0
        %453 = vmatpush.xpose.msra.mxu0 0.0
        %454 = vmatpush.xpose.msra.mxu0 0.0
        %455 = vmatpush.xpose.msra.mxu0 %v439
        %456 = vmatpush.xpose.msra.mxu0 %v437
        %457 = vmatmul.f32.gmra.mxu0 %v433
        %v458 = vpop.f32.mrf.mxu0
        %v459 = vadd.f32 0.0, %v458
        %460 = vmatmul.f32.gmra.mxu0 %v435
        %v461 = vpop.f32.mrf.mxu0
        %v462 = vadd.f32 0.0, %v461
        %463 = vdwg.mxu0
        %v464 = vmul.f32 %v459, 0.17677669
        %v465 = vmul.f32 %v462, 0.17677669
        %v466 = vsel %vm389, %v464, -1e+09
        %v467 = vsel %vm390, %v465, -1e+09
        %vm468 = vcmask 130048
        %v469 = vsel %vm468, %v466, -inf
        %470 = vmax.xlane.f32.xlu0 %v469
        %v471 = vpop.xlane.xlu0 %470
        %v472 = vsel %vm468, %v467, -inf
        %473 = vmax.xlane.f32.xlu0 %v472
        %v474 = vpop.xlane.xlu0 %473
        %v475 = vsub.f32 %v466, %v471
        %v476 = vsub.f32 %v467, %v474
        %v477 = vmul.f32 %v475, 1.442695
        %v478 = vpow.pop %v477
        %v479 = vmul.f32 %v476, 1.442695
        %v480 = vpow.pop %v479
        %v481 = vsel %vm468, %v478, 0.0
        %482 = vadd.xlane.f32.xlu0 %v481
        %v483 = vpop.xlane.xlu0 %482
        %v484 = vsel %vm468, %v480, 0.0
        %485 = vadd.xlane.f32.xlu0 %v484
        %v486 = vpop.xlane.xlu0 %485
        %v487 = vrcp.pop %v483
        %v488 = vmul.f32 %v483, %v487
        %v489 = vsub.f32 1.0, %v488
        %v490 = vmul.f32 %v487, %v489
        %v491 = vadd.f32 %v487, %v490
        %vm492 = vweird.f32 %v483
        %vm493 = vweird.f32 %v487
        %vm494 = vmor %vm492, %vm493
        %v495 = vsel %vm494, %v487, %v491
        %v496 = vand.u32 2147483647, %v483
        %vm497 = vcmp.eq.f32.partialorder %v496, 8.507059e+37
        %v498 = vand.u32 %v483, 2147483648
        %v499 = vor.u32 1.1754944e-38, %v498
        %v500 = vsel %vm497, %v499, %v495
        %v501 = vmul.f32 %v478, %v500
        %v502 = vrcp.pop %v486
        %v503 = vmul.f32 %v486, %v502
        %v504 = vsub.f32 1.0, %v503
        %v505 = vmul.f32 %v502, %v504
        %v506 = vadd.f32 %v502, %v505
        %vm507 = vweird.f32 %v486
        %vm508 = vweird.f32 %v502
        %vm509 = vmor %vm507, %vm508
        %v510 = vsel %vm509, %v502, %v506
        %v511 = vand.u32 2147483647, %v486
        %vm512 = vcmp.eq.f32.partialorder %v511, 8.507059e+37
        %v513 = vand.u32 %v486, 2147483648
        %v514 = vor.u32 1.1754944e-38, %v513
        %v515 = vsel %vm512, %v514, %v510
        %v516 = vmul.f32 %v480, %v515
        %517 = vrot.lane.b32.xlu0 %v422, 64
        %v518 = vpop.permute.xlu0 %517
        %519 = vrot.lane.b32.xlu0 %v425, 64
        %v520 = vpop.permute.xlu0 %519
        %v524 = vsel %vm468, %v501, 0
        %v527 = vsel %vm468, %v516, 0
        %529 = vmatpush.msra.mxu0 0.0
        %530 = vmatpush.msra.mxu0 0.0
        %531 = vmatpush.msra.mxu0 0.0
        %532 = vmatpush.msra.mxu0 0.0
        %533 = vmatpush.msra.mxu0 0.0
        %534 = vmatpush.msra.mxu0 0.0
        %535 = vmatpush.msra.mxu0 0.0
        %536 = vmatpush.msra.mxu0 0.0
        %537 = vmatpush.msra.mxu0 0.0
        %538 = vmatpush.msra.mxu0 0.0
        %539 = vmatpush.msra.mxu0 0.0
        %540 = vmatpush.msra.mxu0 0.0
        %541 = vmatpush.msra.mxu0 0.0
        %542 = vmatpush.msra.mxu0 0.0
        %543 = vmatpush.msra.mxu0 %v520
        %544 = vmatpush.msra.mxu0 %v518
        %545 = vmatmul.f32.gmra.mxu0 %v524
        %v546 = vpop.f32.mrf.mxu0
        %v547 = vadd.f32 0.0, %v546
        %548 = vmatmul.f32.gmra.mxu0 %v527
        %v549 = vpop.f32.mrf.mxu0
        %v550 = vadd.f32 0.0, %v549
        %551 = vdwg.mxu0
        %v552 = vld [vmem:[%s6] sm:$0xff]
        %v553 = vld [vmem:[%s6 + $0x8] sm:$0xff]
        %v554 = vld [vmem:[%s6 + $0x10] sm:$0xff]
        %v555 = vld [vmem:[%s6 + $0x18] sm:$0xff]
        %v557 = vsel %vm397, %v547, 0
        %v560 = vsel %vm397, %v550, 0
        %562 = vmatpush.msra.mxu0 0.0
        %563 = vmatpush.msra.mxu0 0.0
        %564 = vmatpush.msra.mxu0 0.0
        %565 = vmatpush.msra.mxu0 0.0
        %566 = vmatpush.msra.mxu0 0.0
        %567 = vmatpush.msra.mxu0 0.0
        %568 = vmatpush.msra.mxu0 0.0
        %569 = vmatpush.msra.mxu0 0.0
        %570 = vmatpush.msra.mxu0 0.0
        %571 = vmatpush.msra.mxu0 0.0
        %572 = vmatpush.msra.mxu0 0.0
        %573 = vmatpush.msra.mxu0 0.0
        %574 = vmatpush.msra.mxu0 %v555
        %575 = vmatpush.msra.mxu0 %v554
        %576 = vmatpush.msra.mxu0 %v553
        %577 = vmatpush.msra.mxu0 %v552
        %578 = vmatmul.f32.gmra.mxu0 %v557
        %v579 = vpop.f32.mrf.mxu0
        %v580 = vadd.f32 %v391, %v579
        %581 = vmatmul.f32.gmra.mxu0 %v560
        %v582 = vpop.f32.mrf.mxu0
        %v583 = vadd.f32 %v392, %v582
        %584 = vdwg.mxu0
        %v585 = vld [vmem:[%s7] sm:$0xff]
        %v586 = vld [vmem:[%s7 + $0x8] sm:$0xff]
        %v587 = vld [vmem:[%s7 + $0x10] sm:$0xff]
        %v588 = vld [vmem:[%s7 + $0x18] sm:$0xff]
        %v590 = vsel %vm397, %v580, 0
        %v593 = vsel %vm397, %v583, 0
        %595 = vmatpush.msra.mxu0 0.0
        %596 = vmatpush.msra.mxu0 0.0
        %597 = vmatpush.msra.mxu0 0.0
        %598 = vmatpush.msra.mxu0 0.0
        %599 = vmatpush.msra.mxu0 0.0
        %600 = vmatpush.msra.mxu0 0.0
        %601 = vmatpush.msra.mxu0 0.0
        %602 = vmatpush.msra.mxu0 0.0
        %603 = vmatpush.msra.mxu0 0.0
        %604 = vmatpush.msra.mxu0 0.0
        %605 = vmatpush.msra.mxu0 0.0
        %606 = vmatpush.msra.mxu0 0.0
        %607 = vmatpush.msra.mxu0 %v588
        %608 = vmatpush.msra.mxu0 %v587
        %609 = vmatpush.msra.mxu0 %v586
        %610 = vmatpush.msra.mxu0 %v585
        %611 = vmatmul.f32.gmra.mxu0 %v590
        %v612 = vpop.f32.mrf.mxu0
        %v613 = vadd.f32 0.0, %v612
        %614 = vmatmul.f32.gmra.mxu0 %v593
        %v615 = vpop.f32.mrf.mxu0
        %v616 = vadd.f32 0.0, %v615
        %617 = vdwg.mxu0
        %v618 = vmax.f32 %v613, 0.0
        %v619 = vmax.f32 %v616, 0.0
        %v620 = vld [vmem:[%s8] sm:$0xff]
        %v621 = vld [vmem:[%s8 + $0x8] sm:$0xff]
        %v622 = vld [vmem:[%s8 + $0x10] sm:$0xff]
        %v623 = vld [vmem:[%s8 + $0x18] sm:$0xff]
        %v624 = vld [vmem:[%s8 + $0x20] sm:$0xff]
        %v625 = vld [vmem:[%s8 + $0x28] sm:$0xff]
        %v626 = vld [vmem:[%s8 + $0x30] sm:$0xff]
        %v627 = vld [vmem:[%s8 + $0x38] sm:$0xff]
        %vm628 = vcmask 523264
        %v630 = vsel %vm628, %v618, 0
        %v633 = vsel %vm628, %v619, 0
        %635 = vmatpush.msra.mxu0 0.0
        %636 = vmatpush.msra.mxu0 0.0
        %637 = vmatpush.msra.mxu0 0.0
        %638 = vmatpush.msra.mxu0 0.0
        %639 = vmatpush.msra.mxu0 0.0
        %640 = vmatpush.msra.mxu0 0.0
        %641 = vmatpush.msra.mxu0 0.0
        %642 = vmatpush.msra.mxu0 0.0
        %643 = vmatpush.msra.mxu0 %v627
        %644 = vmatpush.msra.mxu0 %v626
        %645 = vmatpush.msra.mxu0 %v625
        %646 = vmatpush.msra.mxu0 %v624
        %647 = vmatpush.msra.mxu0 %v623
        %648 = vmatpush.msra.mxu0 %v622
        %649 = vmatpush.msra.mxu0 %v621
        %650 = vmatpush.msra.mxu0 %v620
        %651 = vmatmul.f32.gmra.mxu0 %v630
        %v652 = vpop.f32.mrf.mxu0
        %v653 = vadd.f32 %v580, %v652
        %654 = vmatmul.f32.gmra.mxu0 %v633
        %v655 = vpop.f32.mrf.mxu0
        %v656 = vadd.f32 %v583, %v655
        %657 = vdwg.mxu0
        %v658 = vld [vmem:[%s9] sm:$0xff]
        %v659 = vld [vmem:[%s9 + $0x8] sm:$0xff]
        %v660 = vld [vmem:[%s9 + $0x10] sm:$0xff]
        %v661 = vld [vmem:[%s9 + $0x18] sm:$0xff]
        %v662 = vld [vmem:[%s10] sm:$0x1]
        %v664 = vperm.slane %v662, 0
        %v667 = vsel %vm397, %v653, 0
        %v670 = vsel %vm397, %v656, 0
        %672 = vmatpush.msra.mxu0 0.0
        %673 = vmatpush.msra.mxu0 0.0
        %674 = vmatpush.msra.mxu0 0.0
        %675 = vmatpush.msra.mxu0 0.0
        %676 = vmatpush.msra.mxu0 0.0
        %677 = vmatpush.msra.mxu0 0.0
        %678 = vmatpush.msra.mxu0 0.0
        %679 = vmatpush.msra.mxu0 0.0
        %680 = vmatpush.msra.mxu0 0.0
        %681 = vmatpush.msra.mxu0 0.0
        %682 = vmatpush.msra.mxu0 0.0
        %683 = vmatpush.msra.mxu0 0.0
        %684 = vmatpush.msra.mxu0 %v661
        %685 = vmatpush.msra.mxu0 %v660
        %686 = vmatpush.msra.mxu0 %v659
        %687 = vmatpush.msra.mxu0 %v658
        %688 = vmatmul.f32.gmra.mxu0 %v667
        %v689 = vpop.f32.mrf.mxu0
        %v690 = vadd.f32 %v664, %v689
        %691 = vmatmul.f32.gmra.mxu0 %v670
        %v692 = vpop.f32.mrf.mxu0
        %v693 = vadd.f32 %v664, %v692
        %694 = vdwg.mxu0
        %v695 = vmax.f32 %v690, 0.0
        %v696 = vmax.f32 %v693, 0.0
        %v697 = vand.u32 2147483647, %v690
        %v698 = vand.u32 2147483647, %v693
        %v699 = vsub.f32 0.0, %v697
        %v700 = vsub.f32 0.0, %v698
        %v701 = vmul.f32 %v699, 1.442695
        %v702 = vpow.pop %v701
        %v703 = vmul.f32 %v700, 1.442695
        %v704 = vpow.pop %v703
        %v705 = vadd.f32 %v702, 1.0
        %v706 = vlog2.pop %v705
        %v707 = vmul.f32 %v706, 0.6931472
        %v708 = vmul.f32 -0.5, %v702
        %v709 = vadd.f32 %v708, 1.0
        %v710 = vmul.f32 %v709, %v702
        %v711 = vand.u32 2147483647, %v702
        %vm712 = vcmp.lt.f32.partialorder %v711, 0.0004427343
        %v713 = vsel %vm712, %v710, %v707
        %v714 = vadd.f32 %v704, 1.0
        %v715 = vlog2.pop %v714
        %v716 = vmul.f32 %v715, 0.6931472
        %v717 = vmul.f32 -0.5, %v704
        %v718 = vadd.f32 %v717, 1.0
        %v719 = vmul.f32 %v718, %v704
        %v720 = vand.u32 2147483647, %v704
        %vm721 = vcmp.lt.f32.partialorder %v720, 0.0004427343
        %v722 = vsel %vm721, %v719, %v716
        %v723 = vadd.f32 %v695, %v713
        %v724 = vadd.f32 %v696, %v722
        %vm725 = vcmask 31744
        %v726 = vsel %vm725, %v723, 0.0
        %727 = vadd.xlane.f32.xlu0 %v726
        %v728 = vpop.xlane.xlu0 %727
        %v729 = vsel %vm725, %v724, 0.0
        %730 = vadd.xlane.f32.xlu0 %v729
        %v731 = vpop.xlane.xlu0 %730
        %vm732 = vcmask 64544
        %v733 = vsel %vm732, %v690, -inf
        %734 = vmax.xlane.f32.xlu0 %v733
        %v735 = vpop.xlane.xlu0 %734
        %v736 = vsel %vm732, %v693, -inf
        %737 = vmax.xlane.f32.xlu0 %v736
        %v738 = vpop.xlane.xlu0 %737
        %v739 = vsub.f32 %v690, %v735
        %v740 = vsub.f32 %v693, %v738
        %v741 = vmul.f32 %v739, 1.442695
        %v742 = vpow.pop %v741
        %v743 = vmul.f32 %v740, 1.442695
        %v744 = vpow.pop %v743
        %747 = vrot.lane.b32.xlu0 %v742, 124
        %v748 = vpop.permute.xlu0 %747
        %749 = vrot.lane.b32.xlu0 %v744, 124
        %v750 = vpop.permute.xlu0 %749
        %v753 = vsel %vm725, %v748, 0.0
        %754 = vadd.xlane.f32.xlu0 %v753
        %v755 = vpop.xlane.xlu0 %754
        %v756 = vsel %vm725, %v750, 0.0
        %757 = vadd.xlane.f32.xlu0 %v756
        %v758 = vpop.xlane.xlu0 %757
        %v759 = vlog2.pop %v755
        %v760 = vmul.f32 %v759, 0.6931472
        %v761 = vlog2.pop %v758
        %v762 = vmul.f32 %v761, 0.6931472
        %v763 = vadd.f32 %v735, %v760
        %v764 = vadd.f32 %v738, %v762
        %v765 = vsub.f32 %v690, %v763
        %v766 = vsub.f32 %v693, %v764
        %v767 = vadd.f32 %v728, 1e-09
        %v768 = vadd.f32 %v731, 1e-09
        %v769 = vlog2.pop %v767
        %v770 = vmul.f32 %v769, 0.6931472
        %v771 = vlog2.pop %v768
        %v772 = vmul.f32 %v771, 0.6931472
        %v773 = vmul.f32 %v728, %v328
        %v774 = vmul.f32 %v731, %v329
        %v775 = vsub.f32 %v770, %v773
        %v776 = vsub.f32 %v772, %v774
        %v777 = vmul.f32 %v345, %v775
        %v778 = vmul.f32 %v346, %v776
        %vm779 = vcmask 7168
        %v780 = vsel %vm779, %v777, 0.0
        %v781 = vsel %vm779, %v778, 0.0
        %v782 = vadd.f32 %v780, %v781
        %783 = vadd.xlane.f32.xlu0 %v782
        %v784 = vpop.xlane.xlu0 %783
        %v785 = vrot.slane %v784, 4
        %v786 = vadd.f32 %v784, %v785
        %v787 = vrot.slane %v786, 2
        %v788 = vadd.f32 %v786, %v787
        %v789 = vrot.slane %v788, 1
        %v790 = vadd.f32 %v788, %v789
        %s791 = vtos %v790
        %794 = vrot.lane.b32.xlu0 %v765, 124
        %v795 = vpop.permute.xlu0 %794
        %796 = vrot.lane.b32.xlu0 %v766, 124
        %v797 = vpop.permute.xlu0 %796
        %v800 = vmul.f32 %v330, %v795
        %v801 = vmul.f32 %v331, %v797
        %v802 = vsel %vm725, %v800, 0.0
        %803 = vadd.xlane.f32.xlu0 %v802
        %v804 = vpop.xlane.xlu0 %803
        %v805 = vsel %vm725, %v801, 0.0
        %806 = vadd.xlane.f32.xlu0 %v805
        %v807 = vpop.xlane.xlu0 %806
        %v808 = vmul.f32 %v355, %v804
        %v809 = vmul.f32 %v356, %v807
        %v810 = vsel %vm779, %v808, 0.0
        %v811 = vsel %vm779, %v809, 0.0
        %v812 = vadd.f32 %v810, %v811
        %813 = vadd.xlane.f32.xlu0 %v812
        %v814 = vpop.xlane.xlu0 %813
        %v815 = vrot.slane %v814, 4
        %v816 = vadd.f32 %v814, %v815
        %v817 = vrot.slane %v816, 2
        %v818 = vadd.f32 %v816, %v817
        %v819 = vrot.slane %v818, 1
        %v820 = vadd.f32 %v818, %v819
        %s821 = vtos %v820
        %s822 = sadd.f32 %s791, %s821
        %s823 = ssub.f32 0.0, %s822
        %s824 = scalar_lea.vmem %s2, 16
        %v825 = vld [vmem:[%s824] sm:$0xff]
        %v826 = vld [vmem:[%s824 + $0x8] sm:$0xff]
        %s827 = scalar_lea.vmem %s5, 32
        %v828 = vld [vmem:[%s827] sm:$0xff]
        %v829 = vld [vmem:[%s827 + $0x8] sm:$0xff]
        %v830 = vld [vmem:[%s827 + $0x10] sm:$0xff]
        %v831 = vld [vmem:[%s827 + $0x18] sm:$0xff]
        %v833 = vsel %vm397, %v825, 0
        %v836 = vsel %vm397, %v826, 0
        %838 = vmatpush.msra.mxu0 0.0
        %839 = vmatpush.msra.mxu0 0.0
        %840 = vmatpush.msra.mxu0 0.0
        %841 = vmatpush.msra.mxu0 0.0
        %842 = vmatpush.msra.mxu0 0.0
        %843 = vmatpush.msra.mxu0 0.0
        %844 = vmatpush.msra.mxu0 0.0
        %845 = vmatpush.msra.mxu0 0.0
        %846 = vmatpush.msra.mxu0 0.0
        %847 = vmatpush.msra.mxu0 0.0
        %848 = vmatpush.msra.mxu0 0.0
        %849 = vmatpush.msra.mxu0 0.0
        %850 = vmatpush.msra.mxu0 %v831
        %851 = vmatpush.msra.mxu0 %v830
        %852 = vmatpush.msra.mxu0 %v829
        %853 = vmatpush.msra.mxu0 %v828
        %854 = vmatmul.f32.gmra.mxu0 %v833
        %v855 = vpop.f32.mrf.mxu0
        %v856 = vadd.f32 0.0, %v855
        %857 = vmatmul.f32.gmra.mxu0 %v836
        %v858 = vpop.f32.mrf.mxu0
        %v859 = vadd.f32 0.0, %v858
        %860 = vdwg.mxu0
        %863 = vrot.lane.b32.xlu0 %v856, 96
        %v864 = vpop.permute.xlu0 %863
        %865 = vrot.lane.b32.xlu0 %v859, 96
        %v866 = vpop.permute.xlu0 %865
        %v867 = vsel %vm397, %v856, 0
        %v869 = vsel %vm397, %v859, 0
        %v871 = vsel %vm397, %v864, 0
        %v873 = vsel %vm397, %v866, 0
        %875 = vmatpush.xpose.msra.mxu0 0.0
        %876 = vmatpush.xpose.msra.mxu0 0.0
        %877 = vmatpush.xpose.msra.mxu0 0.0
        %878 = vmatpush.xpose.msra.mxu0 0.0
        %879 = vmatpush.xpose.msra.mxu0 0.0
        %880 = vmatpush.xpose.msra.mxu0 0.0
        %881 = vmatpush.xpose.msra.mxu0 0.0
        %882 = vmatpush.xpose.msra.mxu0 0.0
        %883 = vmatpush.xpose.msra.mxu0 0.0
        %884 = vmatpush.xpose.msra.mxu0 0.0
        %885 = vmatpush.xpose.msra.mxu0 0.0
        %886 = vmatpush.xpose.msra.mxu0 0.0
        %887 = vmatpush.xpose.msra.mxu0 0.0
        %888 = vmatpush.xpose.msra.mxu0 0.0
        %889 = vmatpush.xpose.msra.mxu0 %v873
        %890 = vmatpush.xpose.msra.mxu0 %v871
        %891 = vmatmul.f32.gmra.mxu0 %v867
        %v892 = vpop.f32.mrf.mxu0
        %v893 = vadd.f32 0.0, %v892
        %894 = vmatmul.f32.gmra.mxu0 %v869
        %v895 = vpop.f32.mrf.mxu0
        %v896 = vadd.f32 0.0, %v895
        %897 = vdwg.mxu0
        %v898 = vmul.f32 %v893, 0.17677669
        %v899 = vmul.f32 %v896, 0.17677669
        %v900 = vsel %vm389, %v898, -1e+09
        %v901 = vsel %vm390, %v899, -1e+09
        %v902 = vsel %vm468, %v900, -inf
        %903 = vmax.xlane.f32.xlu0 %v902
        %v904 = vpop.xlane.xlu0 %903
        %v905 = vsel %vm468, %v901, -inf
        %906 = vmax.xlane.f32.xlu0 %v905
        %v907 = vpop.xlane.xlu0 %906
        %v908 = vsub.f32 %v900, %v904
        %v909 = vsub.f32 %v901, %v907
        %v910 = vmul.f32 %v908, 1.442695
        %v911 = vpow.pop %v910
        %v912 = vmul.f32 %v909, 1.442695
        %v913 = vpow.pop %v912
        %v914 = vsel %vm468, %v911, 0.0
        %915 = vadd.xlane.f32.xlu0 %v914
        %v916 = vpop.xlane.xlu0 %915
        %v917 = vsel %vm468, %v913, 0.0
        %918 = vadd.xlane.f32.xlu0 %v917
        %v919 = vpop.xlane.xlu0 %918
        %v920 = vrcp.pop %v916
        %v921 = vmul.f32 %v916, %v920
        %v922 = vsub.f32 1.0, %v921
        %v923 = vmul.f32 %v920, %v922
        %v924 = vadd.f32 %v920, %v923
        %vm925 = vweird.f32 %v916
        %vm926 = vweird.f32 %v920
        %vm927 = vmor %vm925, %vm926
        %v928 = vsel %vm927, %v920, %v924
        %v929 = vand.u32 2147483647, %v916
        %vm930 = vcmp.eq.f32.partialorder %v929, 8.507059e+37
        %v931 = vand.u32 %v916, 2147483648
        %v932 = vor.u32 1.1754944e-38, %v931
        %v933 = vsel %vm930, %v932, %v928
        %v934 = vmul.f32 %v911, %v933
        %v935 = vrcp.pop %v919
        %v936 = vmul.f32 %v919, %v935
        %v937 = vsub.f32 1.0, %v936
        %v938 = vmul.f32 %v935, %v937
        %v939 = vadd.f32 %v935, %v938
        %vm940 = vweird.f32 %v919
        %vm941 = vweird.f32 %v935
        %vm942 = vmor %vm940, %vm941
        %v943 = vsel %vm942, %v935, %v939
        %v944 = vand.u32 2147483647, %v919
        %vm945 = vcmp.eq.f32.partialorder %v944, 8.507059e+37
        %v946 = vand.u32 %v919, 2147483648
        %v947 = vor.u32 1.1754944e-38, %v946
        %v948 = vsel %vm945, %v947, %v943
        %v949 = vmul.f32 %v913, %v948
        %950 = vrot.lane.b32.xlu0 %v856, 64
        %v951 = vpop.permute.xlu0 %950
        %952 = vrot.lane.b32.xlu0 %v859, 64
        %v953 = vpop.permute.xlu0 %952
        %v957 = vsel %vm468, %v934, 0
        %v960 = vsel %vm468, %v949, 0
        %962 = vmatpush.msra.mxu0 0.0
        %963 = vmatpush.msra.mxu0 0.0
        %964 = vmatpush.msra.mxu0 0.0
        %965 = vmatpush.msra.mxu0 0.0
        %966 = vmatpush.msra.mxu0 0.0
        %967 = vmatpush.msra.mxu0 0.0
        %968 = vmatpush.msra.mxu0 0.0
        %969 = vmatpush.msra.mxu0 0.0
        %970 = vmatpush.msra.mxu0 0.0
        %971 = vmatpush.msra.mxu0 0.0
        %972 = vmatpush.msra.mxu0 0.0
        %973 = vmatpush.msra.mxu0 0.0
        %974 = vmatpush.msra.mxu0 0.0
        %975 = vmatpush.msra.mxu0 0.0
        %976 = vmatpush.msra.mxu0 %v953
        %977 = vmatpush.msra.mxu0 %v951
        %978 = vmatmul.f32.gmra.mxu0 %v957
        %v979 = vpop.f32.mrf.mxu0
        %v980 = vadd.f32 0.0, %v979
        %981 = vmatmul.f32.gmra.mxu0 %v960
        %v982 = vpop.f32.mrf.mxu0
        %v983 = vadd.f32 0.0, %v982
        %984 = vdwg.mxu0
        %s985 = scalar_lea.vmem %s6, 32
        %v986 = vld [vmem:[%s985] sm:$0xff]
        %v987 = vld [vmem:[%s985 + $0x8] sm:$0xff]
        %v988 = vld [vmem:[%s985 + $0x10] sm:$0xff]
        %v989 = vld [vmem:[%s985 + $0x18] sm:$0xff]
        %v991 = vsel %vm397, %v980, 0
        %v994 = vsel %vm397, %v983, 0
        %996 = vmatpush.msra.mxu0 0.0
        %997 = vmatpush.msra.mxu0 0.0
        %998 = vmatpush.msra.mxu0 0.0
        %999 = vmatpush.msra.mxu0 0.0
        %1000 = vmatpush.msra.mxu0 0.0
        %1001 = vmatpush.msra.mxu0 0.0
        %1002 = vmatpush.msra.mxu0 0.0
        %1003 = vmatpush.msra.mxu0 0.0
        %1004 = vmatpush.msra.mxu0 0.0
        %1005 = vmatpush.msra.mxu0 0.0
        %1006 = vmatpush.msra.mxu0 0.0
        %1007 = vmatpush.msra.mxu0 0.0
        %1008 = vmatpush.msra.mxu0 %v989
        %1009 = vmatpush.msra.mxu0 %v988
        %1010 = vmatpush.msra.mxu0 %v987
        %1011 = vmatpush.msra.mxu0 %v986
        %1012 = vmatmul.f32.gmra.mxu0 %v991
        %v1013 = vpop.f32.mrf.mxu0
        %v1014 = vadd.f32 %v825, %v1013
        %1015 = vmatmul.f32.gmra.mxu0 %v994
        %v1016 = vpop.f32.mrf.mxu0
        %v1017 = vadd.f32 %v826, %v1016
        %1018 = vdwg.mxu0
        %s1019 = scalar_lea.vmem %s7, 32
        %v1020 = vld [vmem:[%s1019] sm:$0xff]
        %v1021 = vld [vmem:[%s1019 + $0x8] sm:$0xff]
        %v1022 = vld [vmem:[%s1019 + $0x10] sm:$0xff]
        %v1023 = vld [vmem:[%s1019 + $0x18] sm:$0xff]
        %v1025 = vsel %vm397, %v1014, 0
        %v1028 = vsel %vm397, %v1017, 0
        %1030 = vmatpush.msra.mxu0 0.0
        %1031 = vmatpush.msra.mxu0 0.0
        %1032 = vmatpush.msra.mxu0 0.0
        %1033 = vmatpush.msra.mxu0 0.0
        %1034 = vmatpush.msra.mxu0 0.0
        %1035 = vmatpush.msra.mxu0 0.0
        %1036 = vmatpush.msra.mxu0 0.0
        %1037 = vmatpush.msra.mxu0 0.0
        %1038 = vmatpush.msra.mxu0 0.0
        %1039 = vmatpush.msra.mxu0 0.0
        %1040 = vmatpush.msra.mxu0 0.0
        %1041 = vmatpush.msra.mxu0 0.0
        %1042 = vmatpush.msra.mxu0 %v1023
        %1043 = vmatpush.msra.mxu0 %v1022
        %1044 = vmatpush.msra.mxu0 %v1021
        %1045 = vmatpush.msra.mxu0 %v1020
        %1046 = vmatmul.f32.gmra.mxu0 %v1025
        %v1047 = vpop.f32.mrf.mxu0
        %v1048 = vadd.f32 0.0, %v1047
        %1049 = vmatmul.f32.gmra.mxu0 %v1028
        %v1050 = vpop.f32.mrf.mxu0
        %v1051 = vadd.f32 0.0, %v1050
        %1052 = vdwg.mxu0
        %v1053 = vmax.f32 %v1048, 0.0
        %v1054 = vmax.f32 %v1051, 0.0
        %s1055 = scalar_lea.vmem %s8, 64
        %v1056 = vld [vmem:[%s1055] sm:$0xff]
        %v1057 = vld [vmem:[%s1055 + $0x8] sm:$0xff]
        %v1058 = vld [vmem:[%s1055 + $0x10] sm:$0xff]
        %v1059 = vld [vmem:[%s1055 + $0x18] sm:$0xff]
        %v1060 = vld [vmem:[%s1055 + $0x20] sm:$0xff]
        %v1061 = vld [vmem:[%s1055 + $0x28] sm:$0xff]
        %v1062 = vld [vmem:[%s1055 + $0x30] sm:$0xff]
        %v1063 = vld [vmem:[%s1055 + $0x38] sm:$0xff]
        %v1065 = vsel %vm628, %v1053, 0
        %v1068 = vsel %vm628, %v1054, 0
        %1070 = vmatpush.msra.mxu0 0.0
        %1071 = vmatpush.msra.mxu0 0.0
        %1072 = vmatpush.msra.mxu0 0.0
        %1073 = vmatpush.msra.mxu0 0.0
        %1074 = vmatpush.msra.mxu0 0.0
        %1075 = vmatpush.msra.mxu0 0.0
        %1076 = vmatpush.msra.mxu0 0.0
        %1077 = vmatpush.msra.mxu0 0.0
        %1078 = vmatpush.msra.mxu0 %v1063
        %1079 = vmatpush.msra.mxu0 %v1062
        %1080 = vmatpush.msra.mxu0 %v1061
        %1081 = vmatpush.msra.mxu0 %v1060
        %1082 = vmatpush.msra.mxu0 %v1059
        %1083 = vmatpush.msra.mxu0 %v1058
        %1084 = vmatpush.msra.mxu0 %v1057
        %1085 = vmatpush.msra.mxu0 %v1056
        %1086 = vmatmul.f32.gmra.mxu0 %v1065
        %v1087 = vpop.f32.mrf.mxu0
        %v1088 = vadd.f32 %v1014, %v1087
        %1089 = vmatmul.f32.gmra.mxu0 %v1068
        %v1090 = vpop.f32.mrf.mxu0
        %v1091 = vadd.f32 %v1017, %v1090
        %1092 = vdwg.mxu0
        %s1093 = scalar_lea.vmem %s9, 32
        %v1094 = vld [vmem:[%s1093] sm:$0xff]
        %v1095 = vld [vmem:[%s1093 + $0x8] sm:$0xff]
        %v1096 = vld [vmem:[%s1093 + $0x10] sm:$0xff]
        %v1097 = vld [vmem:[%s1093 + $0x18] sm:$0xff]
        %s1098 = scalar_lea.vmem %s10, 1
        %v1099 = vld [vmem:[%s1098] sm:$0x1]
        %v1101 = vperm.slane %v1099, 0
        %v1104 = vsel %vm397, %v1088, 0
        %v1107 = vsel %vm397, %v1091, 0
        %1109 = vmatpush.msra.mxu0 0.0
        %1110 = vmatpush.msra.mxu0 0.0
        %1111 = vmatpush.msra.mxu0 0.0
        %1112 = vmatpush.msra.mxu0 0.0
        %1113 = vmatpush.msra.mxu0 0.0
        %1114 = vmatpush.msra.mxu0 0.0
        %1115 = vmatpush.msra.mxu0 0.0
        %1116 = vmatpush.msra.mxu0 0.0
        %1117 = vmatpush.msra.mxu0 0.0
        %1118 = vmatpush.msra.mxu0 0.0
        %1119 = vmatpush.msra.mxu0 0.0
        %1120 = vmatpush.msra.mxu0 0.0
        %1121 = vmatpush.msra.mxu0 %v1097
        %1122 = vmatpush.msra.mxu0 %v1096
        %1123 = vmatpush.msra.mxu0 %v1095
        %1124 = vmatpush.msra.mxu0 %v1094
        %1125 = vmatmul.f32.gmra.mxu0 %v1104
        %v1126 = vpop.f32.mrf.mxu0
        %v1127 = vadd.f32 %v1101, %v1126
        %1128 = vmatmul.f32.gmra.mxu0 %v1107
        %v1129 = vpop.f32.mrf.mxu0
        %v1130 = vadd.f32 %v1101, %v1129
        %1131 = vdwg.mxu0
        %v1132 = vmax.f32 %v1127, 0.0
        %v1133 = vmax.f32 %v1130, 0.0
        %v1134 = vand.u32 2147483647, %v1127
        %v1135 = vand.u32 2147483647, %v1130
        %v1136 = vsub.f32 0.0, %v1134
        %v1137 = vsub.f32 0.0, %v1135
        %v1138 = vmul.f32 %v1136, 1.442695
        %v1139 = vpow.pop %v1138
        %v1140 = vmul.f32 %v1137, 1.442695
        %v1141 = vpow.pop %v1140
        %v1142 = vadd.f32 %v1139, 1.0
        %v1143 = vlog2.pop %v1142
        %v1144 = vmul.f32 %v1143, 0.6931472
        %v1145 = vmul.f32 -0.5, %v1139
        %v1146 = vadd.f32 %v1145, 1.0
        %v1147 = vmul.f32 %v1146, %v1139
        %v1148 = vand.u32 2147483647, %v1139
        %vm1149 = vcmp.lt.f32.partialorder %v1148, 0.0004427343
        %v1150 = vsel %vm1149, %v1147, %v1144
        %v1151 = vadd.f32 %v1141, 1.0
        %v1152 = vlog2.pop %v1151
        %v1153 = vmul.f32 %v1152, 0.6931472
        %v1154 = vmul.f32 -0.5, %v1141
        %v1155 = vadd.f32 %v1154, 1.0
        %v1156 = vmul.f32 %v1155, %v1141
        %v1157 = vand.u32 2147483647, %v1141
        %vm1158 = vcmp.lt.f32.partialorder %v1157, 0.0004427343
        %v1159 = vsel %vm1158, %v1156, %v1153
        %v1160 = vadd.f32 %v1132, %v1150
        %v1161 = vadd.f32 %v1133, %v1159
        %v1162 = vsel %vm725, %v1160, 0.0
        %1163 = vadd.xlane.f32.xlu0 %v1162
        %v1164 = vpop.xlane.xlu0 %1163
        %v1165 = vsel %vm725, %v1161, 0.0
        %1166 = vadd.xlane.f32.xlu0 %v1165
        %v1167 = vpop.xlane.xlu0 %1166
        %v1168 = vsel %vm732, %v1127, -inf
        %1169 = vmax.xlane.f32.xlu0 %v1168
        %v1170 = vpop.xlane.xlu0 %1169
        %v1171 = vsel %vm732, %v1130, -inf
        %1172 = vmax.xlane.f32.xlu0 %v1171
        %v1173 = vpop.xlane.xlu0 %1172
        %v1174 = vsub.f32 %v1127, %v1170
        %v1175 = vsub.f32 %v1130, %v1173
        %v1176 = vmul.f32 %v1174, 1.442695
        %v1177 = vpow.pop %v1176
        %v1178 = vmul.f32 %v1175, 1.442695
        %v1179 = vpow.pop %v1178
        %1182 = vrot.lane.b32.xlu0 %v1177, 124
        %v1183 = vpop.permute.xlu0 %1182
        %1184 = vrot.lane.b32.xlu0 %v1179, 124
        %v1185 = vpop.permute.xlu0 %1184
        %v1188 = vsel %vm725, %v1183, 0.0
        %1189 = vadd.xlane.f32.xlu0 %v1188
        %v1190 = vpop.xlane.xlu0 %1189
        %v1191 = vsel %vm725, %v1185, 0.0
        %1192 = vadd.xlane.f32.xlu0 %v1191
        %v1193 = vpop.xlane.xlu0 %1192
        %v1194 = vlog2.pop %v1190
        %v1195 = vmul.f32 %v1194, 0.6931472
        %v1196 = vlog2.pop %v1193
        %v1197 = vmul.f32 %v1196, 0.6931472
        %v1198 = vadd.f32 %v1170, %v1195
        %v1199 = vadd.f32 %v1173, %v1197
        %v1200 = vsub.f32 %v1127, %v1198
        %v1201 = vsub.f32 %v1130, %v1199
        %v1202 = vadd.f32 %v1164, 1e-09
        %v1203 = vadd.f32 %v1167, 1e-09
        %v1204 = vlog2.pop %v1202
        %v1205 = vmul.f32 %v1204, 0.6931472
        %v1206 = vlog2.pop %v1203
        %v1207 = vmul.f32 %v1206, 0.6931472
        %v1208 = vmul.f32 %v1164, %v328
        %v1209 = vmul.f32 %v1167, %v329
        %v1210 = vsub.f32 %v1205, %v1208
        %v1211 = vsub.f32 %v1207, %v1209
        %v1212 = vmul.f32 %v345, %v1210
        %v1213 = vmul.f32 %v346, %v1211
        %v1214 = vsel %vm779, %v1212, 0.0
        %v1215 = vsel %vm779, %v1213, 0.0
        %v1216 = vadd.f32 %v1214, %v1215
        %1217 = vadd.xlane.f32.xlu0 %v1216
        %v1218 = vpop.xlane.xlu0 %1217
        %v1219 = vrot.slane %v1218, 4
        %v1220 = vadd.f32 %v1218, %v1219
        %v1221 = vrot.slane %v1220, 2
        %v1222 = vadd.f32 %v1220, %v1221
        %v1223 = vrot.slane %v1222, 1
        %v1224 = vadd.f32 %v1222, %v1223
        %s1225 = vtos %v1224
        %1228 = vrot.lane.b32.xlu0 %v1200, 124
        %v1229 = vpop.permute.xlu0 %1228
        %1230 = vrot.lane.b32.xlu0 %v1201, 124
        %v1231 = vpop.permute.xlu0 %1230
        %v1234 = vmul.f32 %v330, %v1229
        %v1235 = vmul.f32 %v331, %v1231
        %v1236 = vsel %vm725, %v1234, 0.0
        %1237 = vadd.xlane.f32.xlu0 %v1236
        %v1238 = vpop.xlane.xlu0 %1237
        %v1239 = vsel %vm725, %v1235, 0.0
        %1240 = vadd.xlane.f32.xlu0 %v1239
        %v1241 = vpop.xlane.xlu0 %1240
        %v1242 = vmul.f32 %v355, %v1238
        %v1243 = vmul.f32 %v356, %v1241
        %v1244 = vsel %vm779, %v1242, 0.0
        %v1245 = vsel %vm779, %v1243, 0.0
        %v1246 = vadd.f32 %v1244, %v1245
        %1247 = vadd.xlane.f32.xlu0 %v1246
        %v1248 = vpop.xlane.xlu0 %1247
        %v1249 = vrot.slane %v1248, 4
        %v1250 = vadd.f32 %v1248, %v1249
        %v1251 = vrot.slane %v1250, 2
        %v1252 = vadd.f32 %v1250, %v1251
        %v1253 = vrot.slane %v1252, 1
        %v1254 = vadd.f32 %v1252, %v1253
        %s1255 = vtos %v1254
        %s1256 = sadd.f32 %s1225, %s1255
        %s1257 = ssub.f32 0.0, %s1256
        %s1258 = ssub.f32 %s823, %s1257
        %vm1259 = vcmp.eq.s32.totalorder %v333, 0
        %vm1260 = vcmp.eq.s32.totalorder %v358, 0
        %vm1261 = vmand %vm1259, %vm1260
        %vm1262 = vcmp.eq.s32.totalorder %v358, 1
        %vm1263 = vmand %vm1259, %vm1262
        %vm1264 = vcmp.eq.s32.totalorder %v358, 2
        %vm1265 = vmand %vm1259, %vm1264
        %v1266 = vstv %s1257
        %v1267 = vsel %vm1265, %v1266, 0.0
        %v1268 = vstv %s823
        %v1269 = vsel %vm1263, %v1268, %v1267
        %v1270 = vstv %s1258
        %v1271 = vsel %vm1261, %v1270, %v1269
        %1272 = vst [vmem:[%s325] sm:$0xff] %v1271
        %s1273 = sand.u32 %s235, 1
        %s1274 = scalar_lea.sflag [#allocation6], %s1273
        %s1275 = sand.u32 %s235, 1
        %s1276 = smul.addr %s1275, 8
        %s1277 = scalar_lea.vmem [#allocation5], %s1276
        // Predicated region
        $region57: #{tpu_custom_call.1} parent=55 // pred_check
          %p1278 = pneg %p245
        $region58: #{tpu_custom_call.1} parent=55 // pred_check_branch
          %1280 = sbr.rel (%p1278) target = $region60
        $region59: #{tpu_custom_call.1} parent=55 // pred_region
          %1282 = vsyncadd %s1274, 0
          %s1283 = smul.addr %s38, 8
          %s1284 = scalar_lea.hbm %s11, %s1283
          %s1286 = sshll.u32 %s1277, 4
          %s1287 = int_to_ptr.vmem [resolvable:$true] %s1286
          %s1288 = sshll.u32 %s1284, 4
          %s1289 = int_to_ptr.hbm [resolvable:$true] %s1288
          %1291 = dma.vmem_to_hbm [thread:$0]  %s1287, 128, %s1289, %s1274
        $region60: #{tpu_custom_call.1} parent=55 // pred_fallthru
          _
      $region56: #{tpu_custom_call.1} parent=5 // pred_fallthru
        _
      %p1292 = scmp.le.s32.totalorder 2, %s33
      // Predicated region
      $region61: #{tpu_custom_call.1} parent=5 // pred_check
        %p1293 = pneg %p1292
      $region62: #{tpu_custom_call.1} parent=5 // pred_check_branch
        %1295 = sbr.rel (%p1293) target = $region64
      $region63: #{tpu_custom_call.1} parent=5 // pred_region
        %s1296 = ssub.s32 %s33, 2
        // Predicated region
        $region65: #{tpu_custom_call.1} parent=63 // pred_check
          %p1297 = pneg %p251
        $region66: #{tpu_custom_call.1} parent=63 // pred_check_branch
          %1299 = sbr.rel (%p1297) target = $region68
        $region67: #{tpu_custom_call.1} parent=63 // pred_region
          %s1300 = sand.u32 %s236, 1
          %s1301 = scalar_lea.sflag [#allocation6], %s1300
          %s1302 = sand.u32 %s236, 1
          %s1303 = smul.addr %s1302, 8
          %s1304 = scalar_lea.vmem [#allocation5], %s1303
          %1306 = dma.done %s1301, 128
        $region68: #{tpu_custom_call.1} parent=63 // pred_fallthru
          _
      $region64: #{tpu_custom_call.1} parent=5 // pred_fallthru
        _
    $region6: #{tpu_custom_call.1} parent=1 // loop_footer
      %s37 = sadd.s32 1, %s33
    $region7: #{tpu_custom_call.1} parent=1 // loop_footer_branch
      %32 = sbr.rel target = $region3
    $region8: #{tpu_custom_call.1} parent=1 // loop_exit
      _
    %1307 = vsyncpa [#allocation6], 1
    %s1308 = scalar_lea.sflag [#allocation6], 1
    %1309 = vsyncpa %s1308, 1

</llo_original>
